<compile_context>
chip_gen: v7x
topology: tpu7x:2x2x1
jax: 0.10.0
libtpu: 0.0.40
codegen_flags: <defaults>
</compile_context>

<pallas_src>
import math

import numpy as np
import jax
import jax.numpy as jnp
from jax.experimental import pallas as pl
from jax.experimental.pallas import tpu as pltpu


def gaussian_1d(size: int, sigma: float) -> np.ndarray:
    """Normalized 1-D Gaussian; outer(k, k) == gaussian_kernel(size, sigma)."""
    tmp = np.arange(size, dtype=np.float32) - size // 2
    k = 1.0 / (sigma * math.sqrt(2.0 * math.pi)) * np.exp(-0.5 * (tmp / sigma) ** 2)
    return (k / k.sum()).astype(np.float32)


def blur_matrix(n: int, k1d: np.ndarray, pad: int) -> np.ndarray:
    """Banded (n, n) matrix A with A[i, j] = k1d[j - i + pad].

    y = A @ x is the 'same' zero-padded 1-D correlation of x along its leading
    axis; y = x @ A.T is the same correlation along the trailing axis.
    """
    win = len(k1d)
    idx = np.arange(n)
    d = idx[None, :] - idx[:, None] + pad          # d[i, j] = j - i + pad
    valid = (d >= 0) & (d < win)
    return np.where(valid, k1d[np.clip(d, 0, win - 1)], 0.0).astype(np.float32)


def _vmem_limit_bytes() -> int:
    """Generation-aware scoped-VMEM limit (~75% of physical, min 32 MiB)."""
    cap = 64 * 1024 * 1024
    try:
        info = pltpu.get_tpu_info()
        cap = int(getattr(info, "vmem_capacity_bytes", cap))
    except Exception:
        pass
    return max(32 * 1024 * 1024, (cap * 3) // 4)


def _choose_planes_per_block(G: int, H: int, W: int, vmem_limit: int) -> int:
    """Planes per grid step: as large as the VMEM budget allows, but keep
    NB = G // PB >= 2 so both v7x TensorCores get work and DMA pipelines."""
    # Rough live set per plane (f32): 2x double-buffered inputs (4), the 5-wide
    # stacked operand + row-blur + transposed + col-blur (20), SSIM temporaries
    # and double-buffered output (~8)  ->  ~32 plane-equivalents.
    live_planes = 32
    budget = (vmem_limit * 3) // 5
    pb_max = max(1, budget // (live_planes * H * W * 4))
    divisors = [d for d in range(1, G + 1) if G % d == 0 and d <= pb_max]
    multi_step = [d for d in divisors if G // d >= 2]
    # NOTE: if G is prime and > pb_max this degrades to PB=1 (correct, slower).
    return max(multi_step) if multi_step else max(divisors)


def make_ssim_kernel(H, W, PB, emit_map):
    C1 = 0.01 ** 2
    C2 = 0.03 ** 2
    P5 = 5 * PB

    def kernel(aht_ref, awt_ref, x1_ref, x2_ref, out_ref):
        aht = aht_ref[...]                  # (H, H)  column-blur (right-mult)
        awt = awt_ref[...]                  # (W, W)  row-blur    (right-mult)
        x1 = x1_ref[...]                    # (PB, H, W)
        x2 = x2_ref[...]

        # Stack the five blur inputs along the (leading) plane axis so each
        # blur pass is a single large 2-D MXU matmul.
        stack = jnp.concatenate([x1, x2, x1 * x1, x2 * x2, x1 * x2], axis=0)

        # Row pass (blur along W): one (P5*H, W) x (W, W) matmul.
        rb = jnp.dot(stack.reshape(P5 * H, W), awt,
                     preferred_element_type=jnp.float32).reshape(P5, H, W)
        # Single minor-dim transpose (XLU) so the column pass is also 2-D.
        rbt = jnp.swapaxes(rb, 1, 2)                                # (P5, W, H)
        # Column pass (blur along H): one (P5*W, H) x (H, H) matmul.
        cb = jnp.dot(rbt.reshape(P5 * W, H), aht,
                     preferred_element_type=jnp.float32).reshape(P5, W, H)

        mu1 = cb[0 * PB:1 * PB]
        mu2 = cb[1 * PB:2 * PB]
        e11 = cb[2 * PB:3 * PB]
        e22 = cb[3 * PB:4 * PB]
        e12 = cb[4 * PB:5 * PB]

        mu1_sq = mu1 * mu1
        mu2_sq = mu2 * mu2
        mu1_mu2 = mu1 * mu2
        sigma1_sq = e11 - mu1_sq
        sigma2_sq = e22 - mu2_sq
        sigma12 = e12 - mu1_mu2

        # SSIM map, in transposed (PB, W, H) plane orientation.
        ssim = ((2.0 * mu1_mu2 + C1) * (2.0 * sigma12 + C2)) / (
            (mu1_sq + mu2_sq + C1) * (sigma1_sq + sigma2_sq + C2))

        if emit_map:
            out_ref[...] = ssim                              # (PB, W, H)
        else:
            # Per-plane partial sums only -- no HBM map writeback.
            row = jnp.sum(ssim, axis=2)                      # (PB, W)
            out_ref[...] = jnp.sum(row, axis=1, keepdims=True)   # (PB, 1)

    return kernel


def ssim_pallas(img1, img2, *, window_size=11, reduce_mean=True):
    assert img1.shape == img2.shape and img1.ndim == 4
    N, C, H, W = img1.shape
    G = N * C
    pad = window_size // 2

    k1d = gaussian_1d(window_size, 1.5)
    # Right-multiplication forms: y = x @ A.T blurs along the contracted axis.
    AhT = jnp.asarray(blur_matrix(H, k1d, pad).T)
    AwT = jnp.asarray(blur_matrix(W, k1d, pad).T)

    vmem_limit = _vmem_limit_bytes()
    PB = _choose_planes_per_block(G, H, W, vmem_limit)
    NB = G // PB
    assert NB * PB == G

    x1 = img1.astype(jnp.float32).reshape(NB, PB, H, W)
    x2 = img2.astype(jnp.float32).reshape(NB, PB, H, W)

    in_specs = [
        pl.BlockSpec((H, H), lambda g: (0, 0)),                 # AhT (resident)
        pl.BlockSpec((W, W), lambda g: (0, 0)),                 # AwT (resident)
        pl.BlockSpec((None, PB, H, W), lambda g: (g, 0, 0, 0)),  # img1 planes
        pl.BlockSpec((None, PB, H, W), lambda g: (g, 0, 0, 0)),  # img2 planes
    ]
    compiler_params = pltpu.CompilerParams(
        dimension_semantics=("parallel",),
        vmem_limit_bytes=vmem_limit,
    )

    if reduce_mean:
        kernel = make_ssim_kernel(H, W, PB, emit_map=False)
        psums = pl.pallas_call(
            kernel,
            out_shape=jax.ShapeDtypeStruct((NB, PB, 1), jnp.float32),
            grid=(NB,),
            in_specs=in_specs,
            out_specs=pl.BlockSpec((None, PB, 1), lambda g: (g, 0, 0)),
            compiler_params=compiler_params,
        )(AhT, AwT, x1, x2)
        return jnp.sum(psums) / (N * C * H * W)

    # reduce_mean=False: emit the map (planes transposed to (W, H) in-kernel);
    # restore orientation + channel-mean keepdim in the wrapper.
    # TODO(synk): for tiny W the (…, H) output block is not lane-dense; pack
    #             planes into the lane dim once lane-merging relayout is cheap.
    kernel = make_ssim_kernel(H, W, PB, emit_map=True)
    ssim_t = pl.pallas_call(
        kernel,
        out_shape=jax.ShapeDtypeStruct((NB, PB, W, H), jnp.float32),
        grid=(NB,),
        in_specs=in_specs,
        out_specs=pl.BlockSpec((None, PB, W, H), lambda g: (g, 0, 0, 0)),
        compiler_params=compiler_params,
    )(AhT, AwT, x1, x2)
    ssim_map = jnp.swapaxes(ssim_t, 2, 3).reshape(N, C, H, W)
    return jnp.mean(ssim_map, axis=1, keepdims=True)


def _ssim_reference_map(img1, img2, *, window_size=11):
    """Pure-JAX reference (depthwise conv2d), for sanity checking only."""
    N, C, H, W = img1.shape
    pad = window_size // 2
    k1d = jnp.asarray(gaussian_1d(window_size, 1.5))
    k2d = jnp.outer(k1d, k1d)
    w = jnp.broadcast_to(k2d, (C, 1, window_size, window_size))

    def dwconv(x):
        return jax.lax.conv_general_dilated(
            x, w, window_strides=(1, 1), padding=[(pad, pad), (pad, pad)],
            dimension_numbers=("NCHW", "OIHW", "NCHW"), feature_group_count=C)

    mu1, mu2 = dwconv(img1), dwconv(img2)
    mu1_sq, mu2_sq, mu1_mu2 = mu1 * mu1, mu2 * mu2, mu1 * mu2
    s1 = dwconv(img1 * img1) - mu1_sq
    s2 = dwconv(img2 * img2) - mu2_sq
    s12 = dwconv(img1 * img2) - mu1_mu2
    C1, C2 = 0.01 ** 2, 0.03 ** 2
    return (2 * mu1_mu2 + C1) * (2 * s12 + C2) / (
        (mu1_sq + mu2_sq + C1) * (s1 + s2 + C2))


if __name__ == "__main__":
    key = jax.random.PRNGKey(0)
    ka, kb = jax.random.split(key)
    N, C, H, W = 2, 3, 16, 16          # module default channel=3
    img1 = jax.random.uniform(ka, (N, C, H, W), dtype=jnp.float32)
    img2 = jax.random.uniform(kb, (N, C, H, W), dtype=jnp.float32)

    ref_map = jax.block_until_ready(_ssim_reference_map(img1, img2, window_size=11))

    # reduce_mean=True path (scalar)
    out = jax.block_until_ready(ssim_pallas(img1, img2, window_size=11, reduce_mean=True))
    ref = jnp.mean(ref_map)
    assert jnp.allclose(out, ref, rtol=1e-4, atol=1e-4), (out, ref)

    # reduce_mean=False path (channel-mean map, keepdim)
    out_map = jax.block_until_ready(ssim_pallas(img1, img2, window_size=11, reduce_mean=False))
    ref_cm = jnp.mean(ref_map, axis=1, keepdims=True)
    assert out_map.shape == (N, 1, H, W)
    assert jnp.allclose(out_map, ref_cm, rtol=1e-4, atol=1e-4)

    print("KERNEL_OK")
</pallas_src>

<mosaic_0001>
module attributes {stable_mosaic.version = 11 : i64} {
  func.func @kernel(%arg0: i32, %arg1: memref<16x16xf32, #tpu.memory_space<vmem>>, %arg2: memref<16x16xf32, #tpu.memory_space<vmem>>, %arg3: memref<1x3x16x16xf32, #tpu.memory_space<vmem>>, %arg4: memref<1x3x16x16xf32, #tpu.memory_space<vmem>>, %arg5: memref<1x3x1xf32, #tpu.memory_space<vmem>>) attributes {dimension_semantics = [#tpu.dimension_semantics<parallel>], iteration_bounds = array<i64: 2>, scalar_prefetch = 0 : i64, scratch_operands = 0 : i64, tpu.core_type = #tpu.core_type<tc>, window_params = [{pipeline_mode = #tpu.pipeline_mode<synchronous>, transform_indices = @transform_0, window_bounds = array<i64: 16, 16>}, {pipeline_mode = #tpu.pipeline_mode<synchronous>, transform_indices = @transform_1, window_bounds = array<i64: 16, 16>}, {transform_indices = @transform_2, window_bounds = array<i64: 1, 3, 16, 16>}, {transform_indices = @transform_3, window_bounds = array<i64: 1, 3, 16, 16>}, {transform_indices = @transform_4, window_bounds = array<i64: 1, 3, 1>}]} {
    %c0 = arith.constant 0 : index
    %c0_0 = arith.constant 0 : index
    %0 = vector.load %arg1[%c0, %c0_0] : memref<16x16xf32, #tpu.memory_space<vmem>>, vector<16x16xf32>
    %c0_1 = arith.constant 0 : index
    %c0_2 = arith.constant 0 : index
    %1 = vector.load %arg2[%c0_1, %c0_2] : memref<16x16xf32, #tpu.memory_space<vmem>>, vector<16x16xf32>
    %c0_3 = arith.constant 0 : index
    %c0_4 = arith.constant 0 : index
    %c0_5 = arith.constant 0 : index
    %c0_6 = arith.constant 0 : index
    %2 = vector.load %arg3[%c0_3, %c0_4, %c0_5, %c0_6] : memref<1x3x16x16xf32, #tpu.memory_space<vmem>>, vector<1x3x16x16xf32>
    %3 = vector.shape_cast %2 : vector<1x3x16x16xf32> to vector<3x16x16xf32>
    %c0_7 = arith.constant 0 : index
    %c0_8 = arith.constant 0 : index
    %c0_9 = arith.constant 0 : index
    %c0_10 = arith.constant 0 : index
    %4 = vector.load %arg4[%c0_7, %c0_8, %c0_9, %c0_10] : memref<1x3x16x16xf32, #tpu.memory_space<vmem>>, vector<1x3x16x16xf32>
    %5 = vector.shape_cast %4 : vector<1x3x16x16xf32> to vector<3x16x16xf32>
    %6 = arith.mulf %3, %3 : vector<3x16x16xf32>
    %7 = arith.mulf %5, %5 : vector<3x16x16xf32>
    %8 = arith.mulf %3, %5 : vector<3x16x16xf32>
    %9 = tpu.concatenate %3, %5, %6, %7, %8 in 0 : vector<3x16x16xf32>, vector<3x16x16xf32>, vector<3x16x16xf32>, vector<3x16x16xf32>, vector<3x16x16xf32> -> vector<15x16x16xf32>
    %10 = vector.shape_cast %9 : vector<15x16x16xf32> to vector<240x16xf32>
    %cst = arith.constant dense<0.000000e+00> : vector<240x16xf32>
    %11 = tpu.matmul %10, %1, %cst {dimension_numbers = #tpu.dot_dimension_numbers<[1], [0], [0], [1], [0, 0, 1, 1], [], []>} : vector<240x16xf32>, vector<16x16xf32>, vector<240x16xf32> -> vector<240x16xf32>
    %12 = vector.shape_cast %11 : vector<240x16xf32> to vector<15x16x16xf32>
    %13 = tpu.transpose %12, [0, 2, 1] : vector<15x16x16xf32> -> vector<15x16x16xf32>
    %14 = vector.shape_cast %13 : vector<15x16x16xf32> to vector<240x16xf32>
    %cst_11 = arith.constant dense<0.000000e+00> : vector<240x16xf32>
    %15 = tpu.matmul %14, %0, %cst_11 {dimension_numbers = #tpu.dot_dimension_numbers<[1], [0], [0], [1], [0, 0, 1, 1], [], []>} : vector<240x16xf32>, vector<16x16xf32>, vector<240x16xf32> -> vector<240x16xf32>
    %16 = vector.shape_cast %15 : vector<240x16xf32> to vector<15x16x16xf32>
    %17 = vector.extract_strided_slice %16 {offsets = [0, 0, 0], sizes = [3, 16, 16], strides = [1, 1, 1]} : vector<15x16x16xf32> to vector<3x16x16xf32>
    %18 = vector.extract_strided_slice %16 {offsets = [3, 0, 0], sizes = [3, 16, 16], strides = [1, 1, 1]} : vector<15x16x16xf32> to vector<3x16x16xf32>
    %19 = vector.extract_strided_slice %16 {offsets = [6, 0, 0], sizes = [3, 16, 16], strides = [1, 1, 1]} : vector<15x16x16xf32> to vector<3x16x16xf32>
    %20 = vector.extract_strided_slice %16 {offsets = [9, 0, 0], sizes = [3, 16, 16], strides = [1, 1, 1]} : vector<15x16x16xf32> to vector<3x16x16xf32>
    %21 = vector.extract_strided_slice %16 {offsets = [12, 0, 0], sizes = [3, 16, 16], strides = [1, 1, 1]} : vector<15x16x16xf32> to vector<3x16x16xf32>
    %22 = arith.mulf %17, %17 : vector<3x16x16xf32>
    %23 = arith.mulf %18, %18 : vector<3x16x16xf32>
    %24 = arith.mulf %17, %18 : vector<3x16x16xf32>
    %25 = arith.subf %19, %22 : vector<3x16x16xf32>
    %26 = arith.subf %20, %23 : vector<3x16x16xf32>
    %27 = arith.subf %21, %24 : vector<3x16x16xf32>
    %cst_12 = arith.constant 2.000000e+00 : f32
    %28 = vector.broadcast %cst_12 : f32 to vector<3x16x16xf32>
    %29 = arith.mulf %28, %24 : vector<3x16x16xf32>
    %cst_13 = arith.constant 9.99999974E-5 : f32
    %30 = vector.broadcast %cst_13 : f32 to vector<3x16x16xf32>
    %31 = arith.addf %29, %30 : vector<3x16x16xf32>
    %cst_14 = arith.constant 2.000000e+00 : f32
    %32 = vector.broadcast %cst_14 : f32 to vector<3x16x16xf32>
    %33 = arith.mulf %32, %27 : vector<3x16x16xf32>
    %cst_15 = arith.constant 8.99999984E-4 : f32
    %34 = vector.broadcast %cst_15 : f32 to vector<3x16x16xf32>
    %35 = arith.addf %33, %34 : vector<3x16x16xf32>
    %36 = arith.mulf %31, %35 : vector<3x16x16xf32>
    %37 = arith.addf %22, %23 : vector<3x16x16xf32>
    %cst_16 = arith.constant 9.99999974E-5 : f32
    %38 = vector.broadcast %cst_16 : f32 to vector<3x16x16xf32>
    %39 = arith.addf %37, %38 : vector<3x16x16xf32>
    %40 = arith.addf %25, %26 : vector<3x16x16xf32>
    %cst_17 = arith.constant 8.99999984E-4 : f32
    %41 = vector.broadcast %cst_17 : f32 to vector<3x16x16xf32>
    %42 = arith.addf %40, %41 : vector<3x16x16xf32>
    %43 = arith.mulf %39, %42 : vector<3x16x16xf32>
    %44 = arith.divf %36, %43 : vector<3x16x16xf32>
    %cst_18 = arith.constant dense<0.000000e+00> : vector<3x16xf32>
    %45 = vector.multi_reduction <add>, %44, %cst_18 [2] : vector<3x16x16xf32> to vector<3x16xf32>
    %cst_19 = arith.constant dense<0.000000e+00> : vector<3xf32>
    %46 = vector.multi_reduction <add>, %45, %cst_19 [1] : vector<3x16xf32> to vector<3xf32>
    %47 = vector.shape_cast %46 : vector<3xf32> to vector<3x1xf32>
    %c0_20 = arith.constant 0 : index
    %c0_21 = arith.constant 0 : index
    %c0_22 = arith.constant 0 : index
    %48 = vector.load %arg5[%c0_20, %c0_21, %c0_22] : memref<1x3x1xf32, #tpu.memory_space<vmem>>, vector<1x3x1xf32>
    %49 = vector.shape_cast %48 : vector<1x3x1xf32> to vector<3x1xf32>
    %50 = vector.shape_cast %47 : vector<3x1xf32> to vector<1x3x1xf32>
    tpu.vector_store %arg5[%c0_20, %c0_21, %c0_22], %50 {strides = array<i32>} : memref<1x3x1xf32, #tpu.memory_space<vmem>>, vector<1x3x1xf32>,
    return
  }
  func.func @transform_0(%arg0: i32) -> (i32, i32) {
    %c0_i32 = arith.constant 0 : i32
    %c0_i32_0 = arith.constant 0 : i32
    %c0_i32_1 = arith.constant 0 : i32
    return %c0_i32, %c0_i32_0 : i32, i32
  }
  func.func @transform_1(%arg0: i32) -> (i32, i32) {
    %c0_i32 = arith.constant 0 : i32
    %c0_i32_0 = arith.constant 0 : i32
    %c0_i32_1 = arith.constant 0 : i32
    return %c0_i32, %c0_i32_0 : i32, i32
  }
  func.func @transform_2(%arg0: i32) -> (i32, i32, i32, i32) {
    %c0_i32 = arith.constant 0 : i32
    %c0_i32_0 = arith.constant 0 : i32
    %c0_i32_1 = arith.constant 0 : i32
    %c0_i32_2 = arith.constant 0 : i32
    return %arg0, %c0_i32, %c0_i32_0, %c0_i32_1 : i32, i32, i32, i32
  }
  func.func @transform_3(%arg0: i32) -> (i32, i32, i32, i32) {
    %c0_i32 = arith.constant 0 : i32
    %c0_i32_0 = arith.constant 0 : i32
    %c0_i32_1 = arith.constant 0 : i32
    %c0_i32_2 = arith.constant 0 : i32
    return %arg0, %c0_i32, %c0_i32_0, %c0_i32_1 : i32, i32, i32, i32
  }
  func.func @transform_4(%arg0: i32) -> (i32, i32, i32) {
    %c0_i32 = arith.constant 0 : i32
    %c0_i32_0 = arith.constant 0 : i32
    %c0_i32_1 = arith.constant 0 : i32
    return %arg0, %c0_i32, %c0_i32_0 : i32, i32, i32
  }
}

</mosaic_0001>

<llo_original>
// kernel: tpu_custom_call.1
$region0: #{tpu_custom_call.1}
  #allocation0 [shape = 'u32[]', space=smem, size = 0x4, offset = 0x4, fixed_abs, tag = 'smem constant byte address 0x4 - core index']
  #allocation1 [shape = 'u32[144,128]{1,0:T(1,128)}', space=vmem, size = 0x12000, scoped, tag = 'internal scratch']
  %s0 = inlined_call_operand.hbm [shape: f32[16,16], index: 0, kind: input, shape index: {}]
  %s1 = inlined_call_operand.hbm [shape: f32[16,16], index: 1, kind: input, shape index: {}]
  %s2 = inlined_call_operand.hbm [shape: f32[2,3,16,16], index: 2, kind: input, shape index: {}]
  %s3 = inlined_call_operand.hbm [shape: f32[2,3,16,16], index: 3, kind: input, shape index: {}]
  %s4 = inlined_call_operand.vmem [shape: f32[2,3,1], index: 4, kind: output, shape index: {}]
  %s5 = sld [smem:[#allocation0]]
  $region65: #{tpu_custom_call.1} parent=0
    _
  %s7 = ssub.s32 1, %s5
  %s8 = scalar_select 0, %s7, %s5
  $region1: #{tpu_custom_call.1} parent=0
    #allocation2 [shape = 'u8[8192]{0}', space=vmem, size = 0x2000, scoped, tag = 'input window, operand 0, single buffered']
    #allocation3 [shape = 's32[2]{0}', space=sflag, size = 0x8, scoped, tag = 'scoped memory for tpu_custom_call.1']
    #allocation4 [shape = 'u8[8192]{0}', space=vmem, size = 0x2000, scoped, tag = 'input window, operand 1, single buffered']
    #allocation5 [shape = 's32[1]{0}', space=sflag, size = 0x4, scoped, tag = 'scoped memory for tpu_custom_call.1']
    #allocation6 [shape = 'u8[49152]{0}', space=vmem, size = 0xc000, scoped, tag = 'input window, operand 2']
    #allocation7 [shape = 'u8[49152]{0}', space=vmem, size = 0xc000, scoped, tag = 'input window, operand 3']
    %9 = vsyncpa [#allocation3], 0
    %10 = vsyncpa [#allocation5], 0
    loop: start=0, step=1, limit=4
    $region2: #{tpu_custom_call.1} parent=1 // loop_pre_header
      _
    $region3: #{tpu_custom_call.1} parent=1 // loop_header
      %s12 = sphi 0, %s16
      %p13 = scmp.ge.s32.totalorder %s12, 4
      %s20 = sphi 0, %s20
      %s22 = sphi 0, %s20
      %s23 = sphi 0, %s22
      %s37 = sphi 0, %s23
      %s41 = sphi 0, %s41
      %s43 = sphi 0, %s41
      %s44 = sphi 0, %s43
      %s58 = sphi 0, %s44
      %s64 = sphi 0, %s66
      %s67 = sphi 0, %s64
      %s68 = sphi 0, %s67
      %s84 = sphi 0, %s68
      %s90 = sphi 0, %s92
      %s93 = sphi 0, %s90
      %s94 = sphi 0, %s93
      %s110 = sphi 0, %s94
      %s116 = sphi 0, %s118
      %s119 = sphi 0, %s116
      %s120 = sphi 0, %s119
      %s136 = sphi 0, %s120
    $region4: #{tpu_custom_call.1} parent=1 // loop_header_branch
      %15 = sbr.rel (%p13) target = $region8
    $region5: #{tpu_custom_call.1} parent=1 // loop_body
      %s17 = ssub.s32 %s12, 1
      %s18 = ssub.s32 %s12, 2
      %s19 = sadd.s32 %s12, 1
      %s21 = sadd.s32 %s20, 1
      %p24 = scmp.eq.s32.totalorder %s12, 1
      %p25 = scmp.ne.s32.totalorder %s20, %s22
      %p26 = scmp.eq.s32.totalorder %s12, 0
      %p27 = por %p25, %p26
      %p28 = scmp.ne.s32.totalorder %s20, %s22
      %p29 = scmp.eq.s32.totalorder %s17, 1
      %p30 = por %p28, %p29
      %p31 = scmp.ne.s32.totalorder %s22, %s23
      %p32 = scmp.eq.s32.totalorder %s17, 0
      %p33 = por %p31, %p32
      %p34 = scmp.ne.s32.totalorder %s22, %s23
      %p35 = scmp.eq.s32.totalorder %s18, 1
      %p36 = por %p34, %p35
      %p38 = scmp.ne.s32.totalorder %s23, %s37
      %p39 = scmp.eq.s32.totalorder %s18, 0
      %p40 = por %p38, %p39
      %s42 = sadd.s32 %s41, 1
      %p45 = scmp.eq.s32.totalorder %s12, 1
      %p46 = scmp.ne.s32.totalorder %s41, %s43
      %p47 = scmp.eq.s32.totalorder %s12, 0
      %p48 = por %p46, %p47
      %p49 = scmp.ne.s32.totalorder %s41, %s43
      %p50 = scmp.eq.s32.totalorder %s17, 1
      %p51 = por %p49, %p50
      %p52 = scmp.ne.s32.totalorder %s43, %s44
      %p53 = scmp.eq.s32.totalorder %s17, 0
      %p54 = por %p52, %p53
      %p55 = scmp.ne.s32.totalorder %s43, %s44
      %p56 = scmp.eq.s32.totalorder %s18, 1
      %p57 = por %p55, %p56
      %p59 = scmp.ne.s32.totalorder %s44, %s58
      %p60 = scmp.eq.s32.totalorder %s18, 0
      %p61 = por %p59, %p60
      %s62 = ssub.s32 %s12, %s19
      %p63 = scmp.eq.s32.totalorder %s62, 0
      %s65 = sadd.s32 %s64, 1
      %s66 = scalar_select %p63, %s64, %s65
      %p69 = pneg %p63
      %p70 = scmp.eq.s32.totalorder %s12, 1
      %p71 = por %p69, %p70
      %p72 = scmp.ne.s32.totalorder %s64, %s67
      %p73 = scmp.eq.s32.totalorder %s12, 0
      %p74 = por %p72, %p73
      %p75 = scmp.ne.s32.totalorder %s64, %s67
      %p76 = scmp.eq.s32.totalorder %s17, 1
      %p77 = por %p75, %p76
      %p78 = scmp.ne.s32.totalorder %s67, %s68
      %p79 = scmp.eq.s32.totalorder %s17, 0
      %p80 = por %p78, %p79
      %p81 = scmp.ne.s32.totalorder %s67, %s68
      %p82 = scmp.eq.s32.totalorder %s18, 1
      %p83 = por %p81, %p82
      %p85 = scmp.ne.s32.totalorder %s68, %s84
      %p86 = scmp.eq.s32.totalorder %s18, 0
      %p87 = por %p85, %p86
      %s88 = ssub.s32 %s12, %s19
      %p89 = scmp.eq.s32.totalorder %s88, 0
      %s91 = sadd.s32 %s90, 1
      %s92 = scalar_select %p89, %s90, %s91
      %p95 = pneg %p89
      %p96 = scmp.eq.s32.totalorder %s12, 1
      %p97 = por %p95, %p96
      %p98 = scmp.ne.s32.totalorder %s90, %s93
      %p99 = scmp.eq.s32.totalorder %s12, 0
      %p100 = por %p98, %p99
      %p101 = scmp.ne.s32.totalorder %s90, %s93
      %p102 = scmp.eq.s32.totalorder %s17, 1
      %p103 = por %p101, %p102
      %p104 = scmp.ne.s32.totalorder %s93, %s94
      %p105 = scmp.eq.s32.totalorder %s17, 0
      %p106 = por %p104, %p105
      %p107 = scmp.ne.s32.totalorder %s93, %s94
      %p108 = scmp.eq.s32.totalorder %s18, 1
      %p109 = por %p107, %p108
      %p111 = scmp.ne.s32.totalorder %s94, %s110
      %p112 = scmp.eq.s32.totalorder %s18, 0
      %p113 = por %p111, %p112
      %s114 = ssub.s32 %s12, %s19
      %p115 = scmp.eq.s32.totalorder %s114, 0
      %s117 = sadd.s32 %s116, 1
      %s118 = scalar_select %p115, %s116, %s117
      %p121 = pneg %p115
      %p122 = scmp.eq.s32.totalorder %s12, 1
      %p123 = por %p121, %p122
      %p124 = scmp.ne.s32.totalorder %s116, %s119
      %p125 = scmp.eq.s32.totalorder %s12, 0
      %p126 = por %p124, %p125
      %p127 = scmp.ne.s32.totalorder %s116, %s119
      %p128 = scmp.eq.s32.totalorder %s17, 1
      %p129 = por %p127, %p128
      %p130 = scmp.ne.s32.totalorder %s119, %s120
      %p131 = scmp.eq.s32.totalorder %s17, 0
      %p132 = por %p130, %p131
      %p133 = scmp.ne.s32.totalorder %s119, %s120
      %p134 = scmp.eq.s32.totalorder %s18, 1
      %p135 = por %p133, %p134
      %p137 = scmp.ne.s32.totalorder %s120, %s136
      %p138 = scmp.eq.s32.totalorder %s18, 0
      %p139 = por %p137, %p138
      %p140 = scmp.le.s32.totalorder 1, %s12
      %p141 = scmp.lt.s32.totalorder %s12, 3
      %p142 = pnand %p140, %p141
      %p143 = pneg %p142
      // Predicated region
      $region9: #{tpu_custom_call.1} parent=5 // pred_check
        _
      $region10: #{tpu_custom_call.1} parent=5 // pred_check_branch
        %145 = sbr.rel (%p142) target = $region12
      $region11: #{tpu_custom_call.1} parent=5 // pred_region
        %s146 = ssub.s32 %s12, 1
        // Predicated region
        $region13: #{tpu_custom_call.1} parent=11 // pred_check
          %p147 = pneg %p33
        $region14: #{tpu_custom_call.1} parent=11 // pred_check_branch
          %149 = sbr.rel (%p147) target = $region16
        $region15: #{tpu_custom_call.1} parent=11 // pred_region
          %s151 = ssub.s32 256, 256
          %152 = vsyncadd [#allocation3], %s151
          %s153 = sshll.u32 [#allocation2], 4
          %s154 = int_to_ptr.vmem [resolvable:$true] %s153
          %159 = dma.hbm_to_vmem [thread:$0]  %s0, 256, %s154, [#allocation3], 128, 128, 8
        $region16: #{tpu_custom_call.1} parent=11 // pred_fallthru
          _
        // Predicated region
        $region17: #{tpu_custom_call.1} parent=11 // pred_check
          %p160 = pneg %p54
        $region18: #{tpu_custom_call.1} parent=11 // pred_check_branch
          %162 = sbr.rel (%p160) target = $region20
        $region19: #{tpu_custom_call.1} parent=11 // pred_region
          %s164 = ssub.s32 256, 256
          %165 = vsyncadd [#allocation5], %s164
          %s166 = sshll.u32 [#allocation4], 4
          %s167 = int_to_ptr.vmem [resolvable:$true] %s166
          %172 = dma.hbm_to_vmem [thread:$0]  %s1, 256, %s167, [#allocation5], 128, 128, 8
        $region20: #{tpu_custom_call.1} parent=11 // pred_fallthru
          _
      $region12: #{tpu_custom_call.1} parent=5 // pred_fallthru
        _
      %p173 = scmp.lt.s32.totalorder %s12, 2
      // Predicated region
      $region21: #{tpu_custom_call.1} parent=5 // pred_check
        %p174 = pneg %p173
      $region22: #{tpu_custom_call.1} parent=5 // pred_check_branch
        %176 = sbr.rel (%p174) target = $region24
      $region23: #{tpu_custom_call.1} parent=5 // pred_region
        // Predicated region
        $region25: #{tpu_custom_call.1} parent=23 // pred_check
          %p177 = pneg %p74
        $region26: #{tpu_custom_call.1} parent=23 // pred_check_branch
          %179 = sbr.rel (%p177) target = $region28
        $region27: #{tpu_custom_call.1} parent=23 // pred_region
          %s180 = sand.u32 %s12, 1
          %s181 = scalar_lea.sflag [#allocation3], %s180
          %s182 = sand.u32 %s64, 1
          %s183 = smul.addr %s182, 48
          %s184 = scalar_lea.vmem [#allocation6], %s183
          %s186 = ssub.s32 768, 768
          %187 = vsyncadd %s181, %s186
          %s188 = smul.addr %s12, 6
          %s189 = smul.addr %s188, 128
          %s190 = scalar_lea.hbm %s2, %s189
          %s191 = sshll.u32 %s184, 4
          %s192 = int_to_ptr.vmem [resolvable:$true] %s191
          %197 = dma.hbm_to_vmem [thread:$0]  %s190, 768, %s192, %s181, 128, 128, 8
        $region28: #{tpu_custom_call.1} parent=23 // pred_fallthru
          _
        // Predicated region
        $region29: #{tpu_custom_call.1} parent=23 // pred_check
          %p198 = pneg %p100
        $region30: #{tpu_custom_call.1} parent=23 // pred_check_branch
          %200 = sbr.rel (%p198) target = $region32
        $region31: #{tpu_custom_call.1} parent=23 // pred_region
          %s201 = sand.u32 %s12, 1
          %s202 = scalar_lea.sflag [#allocation3], %s201
          %s203 = sand.u32 %s90, 1
          %s204 = smul.addr %s203, 48
          %s205 = scalar_lea.vmem [#allocation7], %s204
          %s207 = ssub.s32 768, 768
          %208 = vsyncadd %s202, %s207
          %s209 = smul.addr %s12, 6
          %s210 = smul.addr %s209, 128
          %s211 = scalar_lea.hbm %s3, %s210
          %s212 = sshll.u32 %s205, 4
          %s213 = int_to_ptr.vmem [resolvable:$true] %s212
          %218 = dma.hbm_to_vmem [thread:$0]  %s211, 768, %s213, %s202, 128, 128, 8
        $region32: #{tpu_custom_call.1} parent=23 // pred_fallthru
          _
      $region24: #{tpu_custom_call.1} parent=5 // pred_fallthru
        _
      %p219 = scmp.le.s32.totalorder 1, %s12
      %p220 = scmp.lt.s32.totalorder %s12, 3
      %p221 = pnand %p219, %p220
      %p222 = pneg %p221
      // Predicated region
      $region33: #{tpu_custom_call.1} parent=5 // pred_check
        _
      $region34: #{tpu_custom_call.1} parent=5 // pred_check_branch
        %224 = sbr.rel (%p221) target = $region36
      $region35: #{tpu_custom_call.1} parent=5 // pred_region
        %s225 = ssub.s32 %s12, 1
        // Predicated region
        $region37: #{tpu_custom_call.1} parent=35 // pred_check
          %p226 = pneg %p33
        $region38: #{tpu_custom_call.1} parent=35 // pred_check_branch
          %228 = sbr.rel (%p226) target = $region40
        $region39: #{tpu_custom_call.1} parent=35 // pred_region
          %229 = dma.done [#allocation3], 256
        $region40: #{tpu_custom_call.1} parent=35 // pred_fallthru
          _
        // Predicated region
        $region41: #{tpu_custom_call.1} parent=35 // pred_check
          %p230 = pneg %p54
        $region42: #{tpu_custom_call.1} parent=35 // pred_check_branch
          %232 = sbr.rel (%p230) target = $region44
        $region43: #{tpu_custom_call.1} parent=35 // pred_region
          %233 = dma.done [#allocation5], 256
        $region44: #{tpu_custom_call.1} parent=35 // pred_fallthru
          _
        %s234 = sand.u32 %s17, 1
        %s235 = scalar_lea.sflag [#allocation3], %s234
        %s236 = sand.u32 %s67, 1
        %s237 = smul.addr %s236, 48
        %s238 = scalar_lea.vmem [#allocation6], %s237
        // Predicated region
        $region45: #{tpu_custom_call.1} parent=35 // pred_check
          %p239 = pneg %p80
        $region46: #{tpu_custom_call.1} parent=35 // pred_check_branch
          %241 = sbr.rel (%p239) target = $region48
        $region47: #{tpu_custom_call.1} parent=35 // pred_region
          %242 = dma.done %s235, 768
        $region48: #{tpu_custom_call.1} parent=35 // pred_fallthru
          _
        %s243 = sand.u32 %s17, 1
        %s244 = scalar_lea.sflag [#allocation3], %s243
        %s245 = sand.u32 %s93, 1
        %s246 = smul.addr %s245, 48
        %s247 = scalar_lea.vmem [#allocation7], %s246
        // Predicated region
        $region49: #{tpu_custom_call.1} parent=35 // pred_check
          %p248 = pneg %p106
        $region50: #{tpu_custom_call.1} parent=35 // pred_check_branch
          %250 = sbr.rel (%p248) target = $region52
        $region51: #{tpu_custom_call.1} parent=35 // pred_region
          %251 = dma.done %s244, 768
        $region52: #{tpu_custom_call.1} parent=35 // pred_fallthru
          _
        %p252 = pneg %p33
        %p253 = pneg %p30
        %p254 = pneg %p54
        %p255 = pneg %p51
        %s256 = sand.u32 %s17, 1
        %s257 = scalar_lea.sflag [#allocation3], %s256
        %s258 = sand.u32 %s67, 1
        %s259 = smul.addr %s258, 48
        %s260 = scalar_lea.vmem [#allocation6], %s259
        %p261 = pneg %p80
        %p262 = pneg %p77
        %s263 = sand.u32 %s17, 1
        %s264 = scalar_lea.sflag [#allocation3], %s263
        %s265 = sand.u32 %s93, 1
        %s266 = smul.addr %s265, 48
        %s267 = scalar_lea.vmem [#allocation7], %s266
        %p268 = pneg %p106
        %p269 = pneg %p103
        %p270 = pneg %p132
        %p271 = pneg %p129
        %p272 = scmp.lt.s32.totalorder %s17, 1
        %s273 = scalar_select %p272, %s17, 1
        %s274 = smul.addr %s273, 4
        %s275 = scalar_lea.vmem %s4, %s274
        %p276 = scmp.lt.s32.totalorder %s17, 1
        %s277 = scalar_select %p276, %s17, 1
        %s278 = smul.addr %s277, 4
        %s279 = scalar_lea.vmem %s4, %s278
        %v280 = vld [vmem:[#allocation2] sm:$0xff]
        %v281 = vld [vmem:[#allocation2 + $0x8] sm:$0xff]
        %v282 = vld [vmem:[#allocation4] sm:$0xff]
        %v283 = vld [vmem:[#allocation4 + $0x8] sm:$0xff]
        %v284 = vld [vmem:[%s238] sm:$0xff]
        %v285 = vld [vmem:[%s238 + $0x8] sm:$0xff]
        %v286 = vld [vmem:[%s238 + $0x10] sm:$0xff]
        %v287 = vld [vmem:[%s238 + $0x18] sm:$0xff]
        %v288 = vld [vmem:[%s238 + $0x20] sm:$0xff]
        %v289 = vld [vmem:[%s238 + $0x28] sm:$0xff]
        %v290 = vld [vmem:[%s247] sm:$0xff]
        %v291 = vld [vmem:[%s247 + $0x8] sm:$0xff]
        %v292 = vld [vmem:[%s247 + $0x10] sm:$0xff]
        %v293 = vld [vmem:[%s247 + $0x18] sm:$0xff]
        %v294 = vld [vmem:[%s247 + $0x20] sm:$0xff]
        %v295 = vld [vmem:[%s247 + $0x28] sm:$0xff]
        %v296 = vmul.f32 %v284, %v284
        %v297 = vmul.f32 %v285, %v285
        %v298 = vmul.f32 %v286, %v286
        %v299 = vmul.f32 %v287, %v287
        %v300 = vmul.f32 %v288, %v288
        %v301 = vmul.f32 %v289, %v289
        %v302 = vmul.f32 %v290, %v290
        %v303 = vmul.f32 %v291, %v291
        %v304 = vmul.f32 %v292, %v292
        %v305 = vmul.f32 %v293, %v293
        %v306 = vmul.f32 %v294, %v294
        %v307 = vmul.f32 %v295, %v295
        %v308 = vmul.f32 %v284, %v290
        %v309 = vmul.f32 %v285, %v291
        %v310 = vmul.f32 %v286, %v292
        %v311 = vmul.f32 %v287, %v293
        %v312 = vmul.f32 %v288, %v294
        %v313 = vmul.f32 %v289, %v295
        %vm314 = vcmask 130048
        %v316 = vsel %vm314, %v284, 0
        %v319 = vsel %vm314, %v285, 0
        %v322 = vsel %vm314, %v286, 0
        %v325 = vsel %vm314, %v287, 0
        %v328 = vsel %vm314, %v288, 0
        %v331 = vsel %vm314, %v289, 0
        %v334 = vsel %vm314, %v290, 0
        %v337 = vsel %vm314, %v291, 0
        %v340 = vsel %vm314, %v292, 0
        %v343 = vsel %vm314, %v293, 0
        %v346 = vsel %vm314, %v294, 0
        %v349 = vsel %vm314, %v295, 0
        %v352 = vsel %vm314, %v296, 0
        %v355 = vsel %vm314, %v297, 0
        %v358 = vsel %vm314, %v298, 0
        %v361 = vsel %vm314, %v299, 0
        %v364 = vsel %vm314, %v300, 0
        %v367 = vsel %vm314, %v301, 0
        %v370 = vsel %vm314, %v302, 0
        %v373 = vsel %vm314, %v303, 0
        %v376 = vsel %vm314, %v304, 0
        %v379 = vsel %vm314, %v305, 0
        %v382 = vsel %vm314, %v306, 0
        %v385 = vsel %vm314, %v307, 0
        %v388 = vsel %vm314, %v308, 0
        %v391 = vsel %vm314, %v309, 0
        %v394 = vsel %vm314, %v310, 0
        %v397 = vsel %vm314, %v311, 0
        %v400 = vsel %vm314, %v312, 0
        %v403 = vsel %vm314, %v313, 0
        %405 = vmatprep.subr.mxu0 0.0
        %406 = vmatpush1.msra.mxu0 %v282
        %407 = vmatprep.subr.mxu0 0.0
        %408 = vmatpush1.msra.mxu0 %v283
        %409 = vmatprep.subr.mxu0 0.0
        %410 = vmatpush1.msra.mxu0 0.0
        %411 = vmatprep.subr.mxu0 0.0
        %412 = vmatpush1.msra.mxu0 0.0
        %413 = vmatprep.subr.mxu0 0.0
        %414 = vmatpush1.msra.mxu0 0.0
        %415 = vmatprep.subr.mxu0 0.0
        %416 = vmatpush1.msra.mxu0 0.0
        %417 = vmatprep.subr.mxu0 0.0
        %418 = vmatpush1.msra.mxu0 0.0
        %419 = vmatprep.subr.mxu0 0.0
        %420 = vmatpush1.msra.mxu0 0.0
        %421 = vmatprep.subr.mxu0 0.0
        %422 = vmatpush1.msra.mxu0 0.0
        %423 = vmatprep.subr.mxu0 0.0
        %424 = vmatpush1.msra.mxu0 0.0
        %425 = vmatprep.subr.mxu0 0.0
        %426 = vmatpush1.msra.mxu0 0.0
        %427 = vmatprep.subr.mxu0 0.0
        %428 = vmatpush1.msra.mxu0 0.0
        %429 = vmatprep.subr.mxu0 0.0
        %430 = vmatpush1.msra.mxu0 0.0
        %431 = vmatprep.subr.mxu0 0.0
        %432 = vmatpush1.msra.mxu0 0.0
        %433 = vmatprep.subr.mxu0 0.0
        %434 = vmatpush1.msra.mxu0 0.0
        %435 = vmatprep.subr.mxu0 0.0
        %436 = vmatpush1.msra.mxu0 0.0
        %437 = vmatprep.subr.mxu0 0.0
        %438 = vmatpush1.msra.mxu0 0.0
        %439 = vmatprep.subr.mxu0 0.0
        %440 = vmatpush1.msra.mxu0 0.0
        %441 = vmatprep.subr.mxu0 0.0
        %442 = vmatpush1.msra.mxu0 0.0
        %443 = vmatprep.subr.mxu0 0.0
        %444 = vmatpush1.msra.mxu0 0.0
        %445 = vmatprep.subr.mxu0 0.0
        %446 = vmatpush1.msra.mxu0 0.0
        %447 = vmatprep.subr.mxu0 0.0
        %448 = vmatpush1.msra.mxu0 0.0
        %449 = vmatprep.subr.mxu0 0.0
        %450 = vmatpush1.msra.mxu0 0.0
        %451 = vmatprep.subr.mxu0 0.0
        %452 = vmatpush1.msra.mxu0 0.0
        %453 = vmatprep.subr.mxu0 0.0
        %454 = vmatpush1.msra.mxu0 0.0
        %455 = vmatprep.subr.mxu0 0.0
        %456 = vmatpush1.msra.mxu0 0.0
        %457 = vmatprep.subr.mxu0 0.0
        %458 = vmatpush1.msra.mxu0 0.0
        %459 = vmatprep.subr.mxu0 0.0
        %460 = vmatpush1.msra.mxu0 0.0
        %461 = vmatprep.subr.mxu0 0.0
        %462 = vmatpush1.msra.mxu0 0.0
        %463 = vmatprep.subr.mxu0 0.0
        %464 = vmatpush1.msra.mxu0 0.0
        %465 = vmatprep.subr.mxu0 0.0
        %466 = vmatpush1.msra.mxu0 0.0
        %467 = vmatprep.subr.mxu0 0.0
        %468 = vmatpush1.msra.mxu0 0.0
        %469 = vmatprep.mubr.f32.mxu0 0.0
        %470 = vmatmul.mubr.f32.gmra.mrb[0].mxu0 %v316
        %v471 = vpop.f32.mrb[0].mxu0
        %v472 = vadd.f32 0.0, %v471
        %v473 = vpop.f32.mrb[0].mxu0
        %474 = vmatprep.mubr.f32.mxu0 0.0
        %475 = vmatmul.mubr.f32.gmra.mrb[0].mxu0 %v319
        %v476 = vpop.f32.mrb[0].mxu0
        %v477 = vadd.f32 0.0, %v476
        %v478 = vpop.f32.mrb[0].mxu0
        %479 = vmatprep.mubr.f32.mxu0 0.0
        %480 = vmatmul.mubr.f32.gmra.mrb[0].mxu0 %v322
        %v481 = vpop.f32.mrb[0].mxu0
        %v482 = vadd.f32 0.0, %v481
        %v483 = vpop.f32.mrb[0].mxu0
        %484 = vmatprep.mubr.f32.mxu0 0.0
        %485 = vmatmul.mubr.f32.gmra.mrb[0].mxu0 %v325
        %v486 = vpop.f32.mrb[0].mxu0
        %v487 = vadd.f32 0.0, %v486
        %v488 = vpop.f32.mrb[0].mxu0
        %489 = vmatprep.mubr.f32.mxu0 0.0
        %490 = vmatmul.mubr.f32.gmra.mrb[0].mxu0 %v328
        %v491 = vpop.f32.mrb[0].mxu0
        %v492 = vadd.f32 0.0, %v491
        %v493 = vpop.f32.mrb[0].mxu0
        %494 = vmatprep.mubr.f32.mxu0 0.0
        %495 = vmatmul.mubr.f32.gmra.mrb[0].mxu0 %v331
        %v496 = vpop.f32.mrb[0].mxu0
        %v497 = vadd.f32 0.0, %v496
        %v498 = vpop.f32.mrb[0].mxu0
        %499 = vmatprep.mubr.f32.mxu0 0.0
        %500 = vmatmul.mubr.f32.gmra.mrb[0].mxu0 %v334
        %v501 = vpop.f32.mrb[0].mxu0
        %v502 = vadd.f32 0.0, %v501
        %v503 = vpop.f32.mrb[0].mxu0
        %504 = vmatprep.mubr.f32.mxu0 0.0
        %505 = vmatmul.mubr.f32.gmra.mrb[0].mxu0 %v337
        %v506 = vpop.f32.mrb[0].mxu0
        %v507 = vadd.f32 0.0, %v506
        %v508 = vpop.f32.mrb[0].mxu0
        %509 = vmatprep.mubr.f32.mxu0 0.0
        %510 = vmatmul.mubr.f32.gmra.mrb[0].mxu0 %v340
        %v511 = vpop.f32.mrb[0].mxu0
        %v512 = vadd.f32 0.0, %v511
        %v513 = vpop.f32.mrb[0].mxu0
        %514 = vmatprep.mubr.f32.mxu0 0.0
        %515 = vmatmul.mubr.f32.gmra.mrb[0].mxu0 %v343
        %v516 = vpop.f32.mrb[0].mxu0
        %v517 = vadd.f32 0.0, %v516
        %v518 = vpop.f32.mrb[0].mxu0
        %519 = vmatprep.mubr.f32.mxu0 0.0
        %520 = vmatmul.mubr.f32.gmra.mrb[0].mxu0 %v346
        %v521 = vpop.f32.mrb[0].mxu0
        %v522 = vadd.f32 0.0, %v521
        %v523 = vpop.f32.mrb[0].mxu0
        %524 = vmatprep.mubr.f32.mxu0 0.0
        %525 = vmatmul.mubr.f32.gmra.mrb[0].mxu0 %v349
        %v526 = vpop.f32.mrb[0].mxu0
        %v527 = vadd.f32 0.0, %v526
        %v528 = vpop.f32.mrb[0].mxu0
        %529 = vmatprep.mubr.f32.mxu0 0.0
        %530 = vmatmul.mubr.f32.gmra.mrb[0].mxu0 %v352
        %v531 = vpop.f32.mrb[0].mxu0
        %v532 = vadd.f32 0.0, %v531
        %v533 = vpop.f32.mrb[0].mxu0
        %534 = vmatprep.mubr.f32.mxu0 0.0
        %535 = vmatmul.mubr.f32.gmra.mrb[0].mxu0 %v355
        %v536 = vpop.f32.mrb[0].mxu0
        %v537 = vadd.f32 0.0, %v536
        %v538 = vpop.f32.mrb[0].mxu0
        %539 = vmatprep.mubr.f32.mxu0 0.0
        %540 = vmatmul.mubr.f32.gmra.mrb[0].mxu0 %v358
        %v541 = vpop.f32.mrb[0].mxu0
        %v542 = vadd.f32 0.0, %v541
        %v543 = vpop.f32.mrb[0].mxu0
        %544 = vmatprep.mubr.f32.mxu0 0.0
        %545 = vmatmul.mubr.f32.gmra.mrb[0].mxu0 %v361
        %v546 = vpop.f32.mrb[0].mxu0
        %v547 = vadd.f32 0.0, %v546
        %v548 = vpop.f32.mrb[0].mxu0
        %549 = vmatprep.mubr.f32.mxu0 0.0
        %550 = vmatmul.mubr.f32.gmra.mrb[0].mxu0 %v364
        %v551 = vpop.f32.mrb[0].mxu0
        %v552 = vadd.f32 0.0, %v551
        %v553 = vpop.f32.mrb[0].mxu0
        %554 = vmatprep.mubr.f32.mxu0 0.0
        %555 = vmatmul.mubr.f32.gmra.mrb[0].mxu0 %v367
        %v556 = vpop.f32.mrb[0].mxu0
        %v557 = vadd.f32 0.0, %v556
        %v558 = vpop.f32.mrb[0].mxu0
        %559 = vmatprep.mubr.f32.mxu0 0.0
        %560 = vmatmul.mubr.f32.gmra.mrb[0].mxu0 %v370
        %v561 = vpop.f32.mrb[0].mxu0
        %v562 = vadd.f32 0.0, %v561
        %v563 = vpop.f32.mrb[0].mxu0
        %564 = vmatprep.mubr.f32.mxu0 0.0
        %565 = vmatmul.mubr.f32.gmra.mrb[0].mxu0 %v373
        %v566 = vpop.f32.mrb[0].mxu0
        %v567 = vadd.f32 0.0, %v566
        %v568 = vpop.f32.mrb[0].mxu0
        %569 = vmatprep.mubr.f32.mxu0 0.0
        %570 = vmatmul.mubr.f32.gmra.mrb[0].mxu0 %v376
        %v571 = vpop.f32.mrb[0].mxu0
        %v572 = vadd.f32 0.0, %v571
        %v573 = vpop.f32.mrb[0].mxu0
        %574 = vmatprep.mubr.f32.mxu0 0.0
        %575 = vmatmul.mubr.f32.gmra.mrb[0].mxu0 %v379
        %v576 = vpop.f32.mrb[0].mxu0
        %v577 = vadd.f32 0.0, %v576
        %v578 = vpop.f32.mrb[0].mxu0
        %579 = vmatprep.mubr.f32.mxu0 0.0
        %580 = vmatmul.mubr.f32.gmra.mrb[0].mxu0 %v382
        %v581 = vpop.f32.mrb[0].mxu0
        %v582 = vadd.f32 0.0, %v581
        %v583 = vpop.f32.mrb[0].mxu0
        %584 = vmatprep.mubr.f32.mxu0 0.0
        %585 = vmatmul.mubr.f32.gmra.mrb[0].mxu0 %v385
        %v586 = vpop.f32.mrb[0].mxu0
        %v587 = vadd.f32 0.0, %v586
        %v588 = vpop.f32.mrb[0].mxu0
        %589 = vmatprep.mubr.f32.mxu0 0.0
        %590 = vmatmul.mubr.f32.gmra.mrb[0].mxu0 %v388
        %v591 = vpop.f32.mrb[0].mxu0
        %v592 = vadd.f32 0.0, %v591
        %v593 = vpop.f32.mrb[0].mxu0
        %594 = vmatprep.mubr.f32.mxu0 0.0
        %595 = vmatmul.mubr.f32.gmra.mrb[0].mxu0 %v391
        %v596 = vpop.f32.mrb[0].mxu0
        %v597 = vadd.f32 0.0, %v596
        %v598 = vpop.f32.mrb[0].mxu0
        %599 = vmatprep.mubr.f32.mxu0 0.0
        %600 = vmatmul.mubr.f32.gmra.mrb[0].mxu0 %v394
        %v601 = vpop.f32.mrb[0].mxu0
        %v602 = vadd.f32 0.0, %v601
        %v603 = vpop.f32.mrb[0].mxu0
        %604 = vmatprep.mubr.f32.mxu0 0.0
        %605 = vmatmul.mubr.f32.gmra.mrb[0].mxu0 %v397
        %v606 = vpop.f32.mrb[0].mxu0
        %v607 = vadd.f32 0.0, %v606
        %v608 = vpop.f32.mrb[0].mxu0
        %609 = vmatprep.mubr.f32.mxu0 0.0
        %610 = vmatmul.mubr.f32.gmra.mrb[0].mxu0 %v400
        %v611 = vpop.f32.mrb[0].mxu0
        %v612 = vadd.f32 0.0, %v611
        %v613 = vpop.f32.mrb[0].mxu0
        %614 = vmatprep.mubr.f32.mxu0 0.0
        %615 = vmatmul.mubr.f32.gmra.mrb[0].mxu0 %v403
        %v616 = vpop.f32.mrb[0].mxu0
        %v617 = vadd.f32 0.0, %v616
        %v618 = vpop.f32.mrb[0].mxu0
        %619 = vdwg.mxu0
        %620 = vxpose.xlu0.b32.start [1/16] %v472, 128
        %621 = vxpose.xlu0.b32.cont [2/16] %v477, 128
        %622 = vxpose.xlu0.b32.cont [3/16] 0.0, 128
        %623 = vxpose.xlu0.b32.cont [4/16] 0.0, 128
        %624 = vxpose.xlu0.b32.cont [5/16] 0.0, 128
        %625 = vxpose.xlu0.b32.cont [6/16] 0.0, 128
        %626 = vxpose.xlu0.b32.cont [7/16] 0.0, 128
        %627 = vxpose.xlu0.b32.cont [8/16] 0.0, 128
        %628 = vxpose.xlu0.b32.cont [9/16] 0.0, 128
        %629 = vxpose.xlu0.b32.cont [10/16] 0.0, 128
        %630 = vxpose.xlu0.b32.cont [11/16] 0.0, 128
        %631 = vxpose.xlu0.b32.cont [12/16] 0.0, 128
        %632 = vxpose.xlu0.b32.cont [13/16] 0.0, 128
        %633 = vxpose.xlu0.b32.cont [14/16] 0.0, 128
        %634 = vxpose.xlu0.b32.cont [15/16] 0.0, 128
        %635 = vxpose.xlu0.b32.end [16/16] 0.0, 128
        %v636 = vpop.trf.xlu0
        %v637 = vpop.trf.xlu0
        %v638 = vpop.trf.xlu0
        %v639 = vpop.trf.xlu0
        %v640 = vpop.trf.xlu0
        %v641 = vpop.trf.xlu0
        %v642 = vpop.trf.xlu0
        %v643 = vpop.trf.xlu0
        %v644 = vpop.trf.xlu0
        %v645 = vpop.trf.xlu0
        %v646 = vpop.trf.xlu0
        %v647 = vpop.trf.xlu0
        %v648 = vpop.trf.xlu0
        %v649 = vpop.trf.xlu0
        %v650 = vpop.trf.xlu0
        %v651 = vpop.trf.xlu0
        %652 = vxpose.xlu0.b32.start [1/16] %v482, 128
        %653 = vxpose.xlu0.b32.cont [2/16] %v487, 128
        %654 = vxpose.xlu0.b32.cont [3/16] 0.0, 128
        %655 = vxpose.xlu0.b32.cont [4/16] 0.0, 128
        %656 = vxpose.xlu0.b32.cont [5/16] 0.0, 128
        %657 = vxpose.xlu0.b32.cont [6/16] 0.0, 128
        %658 = vxpose.xlu0.b32.cont [7/16] 0.0, 128
        %659 = vxpose.xlu0.b32.cont [8/16] 0.0, 128
        %660 = vxpose.xlu0.b32.cont [9/16] 0.0, 128
        %661 = vxpose.xlu0.b32.cont [10/16] 0.0, 128
        %662 = vxpose.xlu0.b32.cont [11/16] 0.0, 128
        %663 = vxpose.xlu0.b32.cont [12/16] 0.0, 128
        %664 = vxpose.xlu0.b32.cont [13/16] 0.0, 128
        %665 = vxpose.xlu0.b32.cont [14/16] 0.0, 128
        %666 = vxpose.xlu0.b32.cont [15/16] 0.0, 128
        %667 = vxpose.xlu0.b32.end [16/16] 0.0, 128
        %v668 = vpop.trf.xlu0
        %v669 = vpop.trf.xlu0
        %v670 = vpop.trf.xlu0
        %v671 = vpop.trf.xlu0
        %v672 = vpop.trf.xlu0
        %v673 = vpop.trf.xlu0
        %v674 = vpop.trf.xlu0
        %v675 = vpop.trf.xlu0
        %v676 = vpop.trf.xlu0
        %v677 = vpop.trf.xlu0
        %v678 = vpop.trf.xlu0
        %v679 = vpop.trf.xlu0
        %v680 = vpop.trf.xlu0
        %v681 = vpop.trf.xlu0
        %v682 = vpop.trf.xlu0
        %v683 = vpop.trf.xlu0
        %684 = vxpose.xlu0.b32.start [1/16] %v492, 128
        %685 = vxpose.xlu0.b32.cont [2/16] %v497, 128
        %686 = vxpose.xlu0.b32.cont [3/16] 0.0, 128
        %687 = vxpose.xlu0.b32.cont [4/16] 0.0, 128
        %688 = vxpose.xlu0.b32.cont [5/16] 0.0, 128
        %689 = vxpose.xlu0.b32.cont [6/16] 0.0, 128
        %690 = vxpose.xlu0.b32.cont [7/16] 0.0, 128
        %691 = vxpose.xlu0.b32.cont [8/16] 0.0, 128
        %692 = vxpose.xlu0.b32.cont [9/16] 0.0, 128
        %693 = vxpose.xlu0.b32.cont [10/16] 0.0, 128
        %694 = vxpose.xlu0.b32.cont [11/16] 0.0, 128
        %695 = vxpose.xlu0.b32.cont [12/16] 0.0, 128
        %696 = vxpose.xlu0.b32.cont [13/16] 0.0, 128
        %697 = vxpose.xlu0.b32.cont [14/16] 0.0, 128
        %698 = vxpose.xlu0.b32.cont [15/16] 0.0, 128
        %699 = vxpose.xlu0.b32.end [16/16] 0.0, 128
        %v700 = vpop.trf.xlu0
        %v701 = vpop.trf.xlu0
        %v702 = vpop.trf.xlu0
        %v703 = vpop.trf.xlu0
        %v704 = vpop.trf.xlu0
        %v705 = vpop.trf.xlu0
        %v706 = vpop.trf.xlu0
        %v707 = vpop.trf.xlu0
        %v708 = vpop.trf.xlu0
        %v709 = vpop.trf.xlu0
        %v710 = vpop.trf.xlu0
        %v711 = vpop.trf.xlu0
        %v712 = vpop.trf.xlu0
        %v713 = vpop.trf.xlu0
        %v714 = vpop.trf.xlu0
        %v715 = vpop.trf.xlu0
        %716 = vxpose.xlu0.b32.start [1/16] %v502, 128
        %717 = vxpose.xlu0.b32.cont [2/16] %v507, 128
        %718 = vxpose.xlu0.b32.cont [3/16] 0.0, 128
        %719 = vxpose.xlu0.b32.cont [4/16] 0.0, 128
        %720 = vxpose.xlu0.b32.cont [5/16] 0.0, 128
        %721 = vxpose.xlu0.b32.cont [6/16] 0.0, 128
        %722 = vxpose.xlu0.b32.cont [7/16] 0.0, 128
        %723 = vxpose.xlu0.b32.cont [8/16] 0.0, 128
        %724 = vxpose.xlu0.b32.cont [9/16] 0.0, 128
        %725 = vxpose.xlu0.b32.cont [10/16] 0.0, 128
        %726 = vxpose.xlu0.b32.cont [11/16] 0.0, 128
        %727 = vxpose.xlu0.b32.cont [12/16] 0.0, 128
        %728 = vxpose.xlu0.b32.cont [13/16] 0.0, 128
        %729 = vxpose.xlu0.b32.cont [14/16] 0.0, 128
        %730 = vxpose.xlu0.b32.cont [15/16] 0.0, 128
        %731 = vxpose.xlu0.b32.end [16/16] 0.0, 128
        %v732 = vpop.trf.xlu0
        %v733 = vpop.trf.xlu0
        %v734 = vpop.trf.xlu0
        %v735 = vpop.trf.xlu0
        %v736 = vpop.trf.xlu0
        %v737 = vpop.trf.xlu0
        %v738 = vpop.trf.xlu0
        %v739 = vpop.trf.xlu0
        %v740 = vpop.trf.xlu0
        %v741 = vpop.trf.xlu0
        %v742 = vpop.trf.xlu0
        %v743 = vpop.trf.xlu0
        %v744 = vpop.trf.xlu0
        %v745 = vpop.trf.xlu0
        %v746 = vpop.trf.xlu0
        %v747 = vpop.trf.xlu0
        %748 = vxpose.xlu0.b32.start [1/16] %v512, 128
        %749 = vxpose.xlu0.b32.cont [2/16] %v517, 128
        %750 = vxpose.xlu0.b32.cont [3/16] 0.0, 128
        %751 = vxpose.xlu0.b32.cont [4/16] 0.0, 128
        %752 = vxpose.xlu0.b32.cont [5/16] 0.0, 128
        %753 = vxpose.xlu0.b32.cont [6/16] 0.0, 128
        %754 = vxpose.xlu0.b32.cont [7/16] 0.0, 128
        %755 = vxpose.xlu0.b32.cont [8/16] 0.0, 128
        %756 = vxpose.xlu0.b32.cont [9/16] 0.0, 128
        %757 = vxpose.xlu0.b32.cont [10/16] 0.0, 128
        %758 = vxpose.xlu0.b32.cont [11/16] 0.0, 128
        %759 = vxpose.xlu0.b32.cont [12/16] 0.0, 128
        %760 = vxpose.xlu0.b32.cont [13/16] 0.0, 128
        %761 = vxpose.xlu0.b32.cont [14/16] 0.0, 128
        %762 = vxpose.xlu0.b32.cont [15/16] 0.0, 128
        %763 = vxpose.xlu0.b32.end [16/16] 0.0, 128
        %v764 = vpop.trf.xlu0
        %v765 = vpop.trf.xlu0
        %v766 = vpop.trf.xlu0
        %v767 = vpop.trf.xlu0
        %v768 = vpop.trf.xlu0
        %v769 = vpop.trf.xlu0
        %v770 = vpop.trf.xlu0
        %v771 = vpop.trf.xlu0
        %v772 = vpop.trf.xlu0
        %v773 = vpop.trf.xlu0
        %v774 = vpop.trf.xlu0
        %v775 = vpop.trf.xlu0
        %v776 = vpop.trf.xlu0
        %v777 = vpop.trf.xlu0
        %v778 = vpop.trf.xlu0
        %v779 = vpop.trf.xlu0
        %780 = vxpose.xlu0.b32.start [1/16] %v522, 128
        %781 = vxpose.xlu0.b32.cont [2/16] %v527, 128
        %782 = vxpose.xlu0.b32.cont [3/16] 0.0, 128
        %783 = vxpose.xlu0.b32.cont [4/16] 0.0, 128
        %784 = vxpose.xlu0.b32.cont [5/16] 0.0, 128
        %785 = vxpose.xlu0.b32.cont [6/16] 0.0, 128
        %786 = vxpose.xlu0.b32.cont [7/16] 0.0, 128
        %787 = vxpose.xlu0.b32.cont [8/16] 0.0, 128
        %788 = vxpose.xlu0.b32.cont [9/16] 0.0, 128
        %789 = vxpose.xlu0.b32.cont [10/16] 0.0, 128
        %790 = vxpose.xlu0.b32.cont [11/16] 0.0, 128
        %791 = vxpose.xlu0.b32.cont [12/16] 0.0, 128
        %792 = vxpose.xlu0.b32.cont [13/16] 0.0, 128
        %793 = vxpose.xlu0.b32.cont [14/16] 0.0, 128
        %794 = vxpose.xlu0.b32.cont [15/16] 0.0, 128
        %795 = vxpose.xlu0.b32.end [16/16] 0.0, 128
        %v796 = vpop.trf.xlu0
        %v797 = vpop.trf.xlu0
        %v798 = vpop.trf.xlu0
        %v799 = vpop.trf.xlu0
        %v800 = vpop.trf.xlu0
        %v801 = vpop.trf.xlu0
        %v802 = vpop.trf.xlu0
        %v803 = vpop.trf.xlu0
        %v804 = vpop.trf.xlu0
        %v805 = vpop.trf.xlu0
        %v806 = vpop.trf.xlu0
        %v807 = vpop.trf.xlu0
        %v808 = vpop.trf.xlu0
        %v809 = vpop.trf.xlu0
        %v810 = vpop.trf.xlu0
        %v811 = vpop.trf.xlu0
        %812 = vxpose.xlu0.b32.start [1/16] %v532, 128
        %813 = vxpose.xlu0.b32.cont [2/16] %v537, 128
        %814 = vxpose.xlu0.b32.cont [3/16] 0.0, 128
        %815 = vxpose.xlu0.b32.cont [4/16] 0.0, 128
        %816 = vxpose.xlu0.b32.cont [5/16] 0.0, 128
        %817 = vxpose.xlu0.b32.cont [6/16] 0.0, 128
        %818 = vxpose.xlu0.b32.cont [7/16] 0.0, 128
        %819 = vxpose.xlu0.b32.cont [8/16] 0.0, 128
        %820 = vxpose.xlu0.b32.cont [9/16] 0.0, 128
        %821 = vxpose.xlu0.b32.cont [10/16] 0.0, 128
        %822 = vxpose.xlu0.b32.cont [11/16] 0.0, 128
        %823 = vxpose.xlu0.b32.cont [12/16] 0.0, 128
        %824 = vxpose.xlu0.b32.cont [13/16] 0.0, 128
        %825 = vxpose.xlu0.b32.cont [14/16] 0.0, 128
        %826 = vxpose.xlu0.b32.cont [15/16] 0.0, 128
        %827 = vxpose.xlu0.b32.end [16/16] 0.0, 128
        %v828 = vpop.trf.xlu0
        %v829 = vpop.trf.xlu0
        %v830 = vpop.trf.xlu0
        %v831 = vpop.trf.xlu0
        %v832 = vpop.trf.xlu0
        %v833 = vpop.trf.xlu0
        %v834 = vpop.trf.xlu0
        %v835 = vpop.trf.xlu0
        %v836 = vpop.trf.xlu0
        %v837 = vpop.trf.xlu0
        %v838 = vpop.trf.xlu0
        %v839 = vpop.trf.xlu0
        %v840 = vpop.trf.xlu0
        %v841 = vpop.trf.xlu0
        %v842 = vpop.trf.xlu0
        %v843 = vpop.trf.xlu0
        %844 = vxpose.xlu0.b32.start [1/16] %v542, 128
        %845 = vxpose.xlu0.b32.cont [2/16] %v547, 128
        %846 = vxpose.xlu0.b32.cont [3/16] 0.0, 128
        %847 = vxpose.xlu0.b32.cont [4/16] 0.0, 128
        %848 = vxpose.xlu0.b32.cont [5/16] 0.0, 128
        %849 = vxpose.xlu0.b32.cont [6/16] 0.0, 128
        %850 = vxpose.xlu0.b32.cont [7/16] 0.0, 128
        %851 = vxpose.xlu0.b32.cont [8/16] 0.0, 128
        %852 = vxpose.xlu0.b32.cont [9/16] 0.0, 128
        %853 = vxpose.xlu0.b32.cont [10/16] 0.0, 128
        %854 = vxpose.xlu0.b32.cont [11/16] 0.0, 128
        %855 = vxpose.xlu0.b32.cont [12/16] 0.0, 128
        %856 = vxpose.xlu0.b32.cont [13/16] 0.0, 128
        %857 = vxpose.xlu0.b32.cont [14/16] 0.0, 128
        %858 = vxpose.xlu0.b32.cont [15/16] 0.0, 128
        %859 = vxpose.xlu0.b32.end [16/16] 0.0, 128
        %v860 = vpop.trf.xlu0
        %v861 = vpop.trf.xlu0
        %v862 = vpop.trf.xlu0
        %v863 = vpop.trf.xlu0
        %v864 = vpop.trf.xlu0
        %v865 = vpop.trf.xlu0
        %v866 = vpop.trf.xlu0
        %v867 = vpop.trf.xlu0
        %v868 = vpop.trf.xlu0
        %v869 = vpop.trf.xlu0
        %v870 = vpop.trf.xlu0
        %v871 = vpop.trf.xlu0
        %v872 = vpop.trf.xlu0
        %v873 = vpop.trf.xlu0
        %v874 = vpop.trf.xlu0
        %v875 = vpop.trf.xlu0
        %876 = vxpose.xlu0.b32.start [1/16] %v552, 128
        %877 = vxpose.xlu0.b32.cont [2/16] %v557, 128
        %878 = vxpose.xlu0.b32.cont [3/16] 0.0, 128
        %879 = vxpose.xlu0.b32.cont [4/16] 0.0, 128
        %880 = vxpose.xlu0.b32.cont [5/16] 0.0, 128
        %881 = vxpose.xlu0.b32.cont [6/16] 0.0, 128
        %882 = vxpose.xlu0.b32.cont [7/16] 0.0, 128
        %883 = vxpose.xlu0.b32.cont [8/16] 0.0, 128
        %884 = vxpose.xlu0.b32.cont [9/16] 0.0, 128
        %885 = vxpose.xlu0.b32.cont [10/16] 0.0, 128
        %886 = vxpose.xlu0.b32.cont [11/16] 0.0, 128
        %887 = vxpose.xlu0.b32.cont [12/16] 0.0, 128
        %888 = vxpose.xlu0.b32.cont [13/16] 0.0, 128
        %889 = vxpose.xlu0.b32.cont [14/16] 0.0, 128
        %890 = vxpose.xlu0.b32.cont [15/16] 0.0, 128
        %891 = vxpose.xlu0.b32.end [16/16] 0.0, 128
        %v892 = vpop.trf.xlu0
        %v893 = vpop.trf.xlu0
        %v894 = vpop.trf.xlu0
        %v895 = vpop.trf.xlu0
        %v896 = vpop.trf.xlu0
        %v897 = vpop.trf.xlu0
        %v898 = vpop.trf.xlu0
        %v899 = vpop.trf.xlu0
        %v900 = vpop.trf.xlu0
        %v901 = vpop.trf.xlu0
        %v902 = vpop.trf.xlu0
        %v903 = vpop.trf.xlu0
        %v904 = vpop.trf.xlu0
        %v905 = vpop.trf.xlu0
        %v906 = vpop.trf.xlu0
        %v907 = vpop.trf.xlu0
        %908 = vxpose.xlu0.b32.start [1/16] %v562, 128
        %909 = vxpose.xlu0.b32.cont [2/16] %v567, 128
        %910 = vxpose.xlu0.b32.cont [3/16] 0.0, 128
        %911 = vxpose.xlu0.b32.cont [4/16] 0.0, 128
        %912 = vxpose.xlu0.b32.cont [5/16] 0.0, 128
        %913 = vxpose.xlu0.b32.cont [6/16] 0.0, 128
        %914 = vxpose.xlu0.b32.cont [7/16] 0.0, 128
        %915 = vxpose.xlu0.b32.cont [8/16] 0.0, 128
        %916 = vxpose.xlu0.b32.cont [9/16] 0.0, 128
        %917 = vxpose.xlu0.b32.cont [10/16] 0.0, 128
        %918 = vxpose.xlu0.b32.cont [11/16] 0.0, 128
        %919 = vxpose.xlu0.b32.cont [12/16] 0.0, 128
        %920 = vxpose.xlu0.b32.cont [13/16] 0.0, 128
        %921 = vxpose.xlu0.b32.cont [14/16] 0.0, 128
        %922 = vxpose.xlu0.b32.cont [15/16] 0.0, 128
        %923 = vxpose.xlu0.b32.end [16/16] 0.0, 128
        %v924 = vpop.trf.xlu0
        %v925 = vpop.trf.xlu0
        %v926 = vpop.trf.xlu0
        %v927 = vpop.trf.xlu0
        %v928 = vpop.trf.xlu0
        %v929 = vpop.trf.xlu0
        %v930 = vpop.trf.xlu0
        %v931 = vpop.trf.xlu0
        %v932 = vpop.trf.xlu0
        %v933 = vpop.trf.xlu0
        %v934 = vpop.trf.xlu0
        %v935 = vpop.trf.xlu0
        %v936 = vpop.trf.xlu0
        %v937 = vpop.trf.xlu0
        %v938 = vpop.trf.xlu0
        %v939 = vpop.trf.xlu0
        %940 = vxpose.xlu0.b32.start [1/16] %v572, 128
        %941 = vxpose.xlu0.b32.cont [2/16] %v577, 128
        %942 = vxpose.xlu0.b32.cont [3/16] 0.0, 128
        %943 = vxpose.xlu0.b32.cont [4/16] 0.0, 128
        %944 = vxpose.xlu0.b32.cont [5/16] 0.0, 128
        %945 = vxpose.xlu0.b32.cont [6/16] 0.0, 128
        %946 = vxpose.xlu0.b32.cont [7/16] 0.0, 128
        %947 = vxpose.xlu0.b32.cont [8/16] 0.0, 128
        %948 = vxpose.xlu0.b32.cont [9/16] 0.0, 128
        %949 = vxpose.xlu0.b32.cont [10/16] 0.0, 128
        %950 = vxpose.xlu0.b32.cont [11/16] 0.0, 128
        %951 = vxpose.xlu0.b32.cont [12/16] 0.0, 128
        %952 = vxpose.xlu0.b32.cont [13/16] 0.0, 128
        %953 = vxpose.xlu0.b32.cont [14/16] 0.0, 128
        %954 = vxpose.xlu0.b32.cont [15/16] 0.0, 128
        %955 = vxpose.xlu0.b32.end [16/16] 0.0, 128
        %v956 = vpop.trf.xlu0
        %v957 = vpop.trf.xlu0
        %v958 = vpop.trf.xlu0
        %v959 = vpop.trf.xlu0
        %v960 = vpop.trf.xlu0
        %v961 = vpop.trf.xlu0
        %v962 = vpop.trf.xlu0
        %v963 = vpop.trf.xlu0
        %v964 = vpop.trf.xlu0
        %v965 = vpop.trf.xlu0
        %v966 = vpop.trf.xlu0
        %v967 = vpop.trf.xlu0
        %v968 = vpop.trf.xlu0
        %v969 = vpop.trf.xlu0
        %v970 = vpop.trf.xlu0
        %v971 = vpop.trf.xlu0
        %972 = vxpose.xlu0.b32.start [1/16] %v582, 128
        %973 = vxpose.xlu0.b32.cont [2/16] %v587, 128
        %974 = vxpose.xlu0.b32.cont [3/16] 0.0, 128
        %975 = vxpose.xlu0.b32.cont [4/16] 0.0, 128
        %976 = vxpose.xlu0.b32.cont [5/16] 0.0, 128
        %977 = vxpose.xlu0.b32.cont [6/16] 0.0, 128
        %978 = vxpose.xlu0.b32.cont [7/16] 0.0, 128
        %979 = vxpose.xlu0.b32.cont [8/16] 0.0, 128
        %980 = vxpose.xlu0.b32.cont [9/16] 0.0, 128
        %981 = vxpose.xlu0.b32.cont [10/16] 0.0, 128
        %982 = vxpose.xlu0.b32.cont [11/16] 0.0, 128
        %983 = vxpose.xlu0.b32.cont [12/16] 0.0, 128
        %984 = vxpose.xlu0.b32.cont [13/16] 0.0, 128
        %985 = vxpose.xlu0.b32.cont [14/16] 0.0, 128
        %986 = vxpose.xlu0.b32.cont [15/16] 0.0, 128
        %987 = vxpose.xlu0.b32.end [16/16] 0.0, 128
        %v988 = vpop.trf.xlu0
        %v989 = vpop.trf.xlu0
        %v990 = vpop.trf.xlu0
        %v991 = vpop.trf.xlu0
        %v992 = vpop.trf.xlu0
        %v993 = vpop.trf.xlu0
        %v994 = vpop.trf.xlu0
        %v995 = vpop.trf.xlu0
        %v996 = vpop.trf.xlu0
        %v997 = vpop.trf.xlu0
        %v998 = vpop.trf.xlu0
        %v999 = vpop.trf.xlu0
        %v1000 = vpop.trf.xlu0
        %v1001 = vpop.trf.xlu0
        %v1002 = vpop.trf.xlu0
        %v1003 = vpop.trf.xlu0
        %1004 = vxpose.xlu0.b32.start [1/16] %v592, 128
        %1005 = vxpose.xlu0.b32.cont [2/16] %v597, 128
        %1006 = vxpose.xlu0.b32.cont [3/16] 0.0, 128
        %1007 = vxpose.xlu0.b32.cont [4/16] 0.0, 128
        %1008 = vxpose.xlu0.b32.cont [5/16] 0.0, 128
        %1009 = vxpose.xlu0.b32.cont [6/16] 0.0, 128
        %1010 = vxpose.xlu0.b32.cont [7/16] 0.0, 128
        %1011 = vxpose.xlu0.b32.cont [8/16] 0.0, 128
        %1012 = vxpose.xlu0.b32.cont [9/16] 0.0, 128
        %1013 = vxpose.xlu0.b32.cont [10/16] 0.0, 128
        %1014 = vxpose.xlu0.b32.cont [11/16] 0.0, 128
        %1015 = vxpose.xlu0.b32.cont [12/16] 0.0, 128
        %1016 = vxpose.xlu0.b32.cont [13/16] 0.0, 128
        %1017 = vxpose.xlu0.b32.cont [14/16] 0.0, 128
        %1018 = vxpose.xlu0.b32.cont [15/16] 0.0, 128
        %1019 = vxpose.xlu0.b32.end [16/16] 0.0, 128
        %v1020 = vpop.trf.xlu0
        %v1021 = vpop.trf.xlu0
        %v1022 = vpop.trf.xlu0
        %v1023 = vpop.trf.xlu0
        %v1024 = vpop.trf.xlu0
        %v1025 = vpop.trf.xlu0
        %v1026 = vpop.trf.xlu0
        %v1027 = vpop.trf.xlu0
        %v1028 = vpop.trf.xlu0
        %v1029 = vpop.trf.xlu0
        %v1030 = vpop.trf.xlu0
        %v1031 = vpop.trf.xlu0
        %v1032 = vpop.trf.xlu0
        %v1033 = vpop.trf.xlu0
        %v1034 = vpop.trf.xlu0
        %v1035 = vpop.trf.xlu0
        %1036 = vxpose.xlu0.b32.start [1/16] %v602, 128
        %1037 = vxpose.xlu0.b32.cont [2/16] %v607, 128
        %1038 = vxpose.xlu0.b32.cont [3/16] 0.0, 128
        %1039 = vxpose.xlu0.b32.cont [4/16] 0.0, 128
        %1040 = vxpose.xlu0.b32.cont [5/16] 0.0, 128
        %1041 = vxpose.xlu0.b32.cont [6/16] 0.0, 128
        %1042 = vxpose.xlu0.b32.cont [7/16] 0.0, 128
        %1043 = vxpose.xlu0.b32.cont [8/16] 0.0, 128
        %1044 = vxpose.xlu0.b32.cont [9/16] 0.0, 128
        %1045 = vxpose.xlu0.b32.cont [10/16] 0.0, 128
        %1046 = vxpose.xlu0.b32.cont [11/16] 0.0, 128
        %1047 = vxpose.xlu0.b32.cont [12/16] 0.0, 128
        %1048 = vxpose.xlu0.b32.cont [13/16] 0.0, 128
        %1049 = vxpose.xlu0.b32.cont [14/16] 0.0, 128
        %1050 = vxpose.xlu0.b32.cont [15/16] 0.0, 128
        %1051 = vxpose.xlu0.b32.end [16/16] 0.0, 128
        %v1052 = vpop.trf.xlu0
        %v1053 = vpop.trf.xlu0
        %v1054 = vpop.trf.xlu0
        %v1055 = vpop.trf.xlu0
        %v1056 = vpop.trf.xlu0
        %v1057 = vpop.trf.xlu0
        %v1058 = vpop.trf.xlu0
        %v1059 = vpop.trf.xlu0
        %v1060 = vpop.trf.xlu0
        %v1061 = vpop.trf.xlu0
        %v1062 = vpop.trf.xlu0
        %v1063 = vpop.trf.xlu0
        %v1064 = vpop.trf.xlu0
        %v1065 = vpop.trf.xlu0
        %v1066 = vpop.trf.xlu0
        %v1067 = vpop.trf.xlu0
        %1068 = vxpose.xlu0.b32.start [1/16] %v612, 128
        %1069 = vxpose.xlu0.b32.cont [2/16] %v617, 128
        %1070 = vxpose.xlu0.b32.cont [3/16] 0.0, 128
        %1071 = vxpose.xlu0.b32.cont [4/16] 0.0, 128
        %1072 = vxpose.xlu0.b32.cont [5/16] 0.0, 128
        %1073 = vxpose.xlu0.b32.cont [6/16] 0.0, 128
        %1074 = vxpose.xlu0.b32.cont [7/16] 0.0, 128
        %1075 = vxpose.xlu0.b32.cont [8/16] 0.0, 128
        %1076 = vxpose.xlu0.b32.cont [9/16] 0.0, 128
        %1077 = vxpose.xlu0.b32.cont [10/16] 0.0, 128
        %1078 = vxpose.xlu0.b32.cont [11/16] 0.0, 128
        %1079 = vxpose.xlu0.b32.cont [12/16] 0.0, 128
        %1080 = vxpose.xlu0.b32.cont [13/16] 0.0, 128
        %1081 = vxpose.xlu0.b32.cont [14/16] 0.0, 128
        %1082 = vxpose.xlu0.b32.cont [15/16] 0.0, 128
        %1083 = vxpose.xlu0.b32.end [16/16] 0.0, 128
        %v1084 = vpop.trf.xlu0
        %v1085 = vpop.trf.xlu0
        %v1086 = vpop.trf.xlu0
        %v1087 = vpop.trf.xlu0
        %v1088 = vpop.trf.xlu0
        %v1089 = vpop.trf.xlu0
        %v1090 = vpop.trf.xlu0
        %v1091 = vpop.trf.xlu0
        %v1092 = vpop.trf.xlu0
        %v1093 = vpop.trf.xlu0
        %v1094 = vpop.trf.xlu0
        %v1095 = vpop.trf.xlu0
        %v1096 = vpop.trf.xlu0
        %v1097 = vpop.trf.xlu0
        %v1098 = vpop.trf.xlu0
        %v1099 = vpop.trf.xlu0
        %v1101 = vsel %vm314, %v636, 0
        %v1104 = vsel %vm314, %v637, 0
        %v1107 = vsel %vm314, %v668, 0
        %v1110 = vsel %vm314, %v669, 0
        %v1113 = vsel %vm314, %v700, 0
        %v1116 = vsel %vm314, %v701, 0
        %v1119 = vsel %vm314, %v732, 0
        %v1122 = vsel %vm314, %v733, 0
        %v1125 = vsel %vm314, %v764, 0
        %v1128 = vsel %vm314, %v765, 0
        %v1131 = vsel %vm314, %v796, 0
        %v1134 = vsel %vm314, %v797, 0
        %v1137 = vsel %vm314, %v828, 0
        %v1140 = vsel %vm314, %v829, 0
        %v1143 = vsel %vm314, %v860, 0
        %v1146 = vsel %vm314, %v861, 0
        %v1149 = vsel %vm314, %v892, 0
        %v1152 = vsel %vm314, %v893, 0
        %v1155 = vsel %vm314, %v924, 0
        %v1158 = vsel %vm314, %v925, 0
        %v1161 = vsel %vm314, %v956, 0
        %v1164 = vsel %vm314, %v957, 0
        %v1167 = vsel %vm314, %v988, 0
        %v1170 = vsel %vm314, %v989, 0
        %v1173 = vsel %vm314, %v1020, 0
        %v1176 = vsel %vm314, %v1021, 0
        %v1179 = vsel %vm314, %v1052, 0
        %v1182 = vsel %vm314, %v1053, 0
        %v1185 = vsel %vm314, %v1084, 0
        %v1188 = vsel %vm314, %v1085, 0
        %1190 = vmatprep.subr.mxu0 0.0
        %1191 = vmatpush1.msra.mxu0 %v280
        %1192 = vmatprep.subr.mxu0 0.0
        %1193 = vmatpush1.msra.mxu0 %v281
        %1194 = vmatprep.subr.mxu0 0.0
        %1195 = vmatpush1.msra.mxu0 0.0
        %1196 = vmatprep.subr.mxu0 0.0
        %1197 = vmatpush1.msra.mxu0 0.0
        %1198 = vmatprep.subr.mxu0 0.0
        %1199 = vmatpush1.msra.mxu0 0.0
        %1200 = vmatprep.subr.mxu0 0.0
        %1201 = vmatpush1.msra.mxu0 0.0
        %1202 = vmatprep.subr.mxu0 0.0
        %1203 = vmatpush1.msra.mxu0 0.0
        %1204 = vmatprep.subr.mxu0 0.0
        %1205 = vmatpush1.msra.mxu0 0.0
        %1206 = vmatprep.subr.mxu0 0.0
        %1207 = vmatpush1.msra.mxu0 0.0
        %1208 = vmatprep.subr.mxu0 0.0
        %1209 = vmatpush1.msra.mxu0 0.0
        %1210 = vmatprep.subr.mxu0 0.0
        %1211 = vmatpush1.msra.mxu0 0.0
        %1212 = vmatprep.subr.mxu0 0.0
        %1213 = vmatpush1.msra.mxu0 0.0
        %1214 = vmatprep.subr.mxu0 0.0
        %1215 = vmatpush1.msra.mxu0 0.0
        %1216 = vmatprep.subr.mxu0 0.0
        %1217 = vmatpush1.msra.mxu0 0.0
        %1218 = vmatprep.subr.mxu0 0.0
        %1219 = vmatpush1.msra.mxu0 0.0
        %1220 = vmatprep.subr.mxu0 0.0
        %1221 = vmatpush1.msra.mxu0 0.0
        %1222 = vmatprep.subr.mxu0 0.0
        %1223 = vmatpush1.msra.mxu0 0.0
        %1224 = vmatprep.subr.mxu0 0.0
        %1225 = vmatpush1.msra.mxu0 0.0
        %1226 = vmatprep.subr.mxu0 0.0
        %1227 = vmatpush1.msra.mxu0 0.0
        %1228 = vmatprep.subr.mxu0 0.0
        %1229 = vmatpush1.msra.mxu0 0.0
        %1230 = vmatprep.subr.mxu0 0.0
        %1231 = vmatpush1.msra.mxu0 0.0
        %1232 = vmatprep.subr.mxu0 0.0
        %1233 = vmatpush1.msra.mxu0 0.0
        %1234 = vmatprep.subr.mxu0 0.0
        %1235 = vmatpush1.msra.mxu0 0.0
        %1236 = vmatprep.subr.mxu0 0.0
        %1237 = vmatpush1.msra.mxu0 0.0
        %1238 = vmatprep.subr.mxu0 0.0
        %1239 = vmatpush1.msra.mxu0 0.0
        %1240 = vmatprep.subr.mxu0 0.0
        %1241 = vmatpush1.msra.mxu0 0.0
        %1242 = vmatprep.subr.mxu0 0.0
        %1243 = vmatpush1.msra.mxu0 0.0
        %1244 = vmatprep.subr.mxu0 0.0
        %1245 = vmatpush1.msra.mxu0 0.0
        %1246 = vmatprep.subr.mxu0 0.0
        %1247 = vmatpush1.msra.mxu0 0.0
        %1248 = vmatprep.subr.mxu0 0.0
        %1249 = vmatpush1.msra.mxu0 0.0
        %1250 = vmatprep.subr.mxu0 0.0
        %1251 = vmatpush1.msra.mxu0 0.0
        %1252 = vmatprep.subr.mxu0 0.0
        %1253 = vmatpush1.msra.mxu0 0.0
        %1254 = vmatprep.mubr.f32.mxu0 0.0
        %1255 = vmatmul.mubr.f32.gmra.mrb[0].mxu0 %v1101
        %v1256 = vpop.f32.mrb[0].mxu0
        %v1257 = vadd.f32 0.0, %v1256
        %v1258 = vpop.f32.mrb[0].mxu0
        %1259 = vmatprep.mubr.f32.mxu0 0.0
        %1260 = vmatmul.mubr.f32.gmra.mrb[0].mxu0 %v1104
        %v1261 = vpop.f32.mrb[0].mxu0
        %v1262 = vadd.f32 0.0, %v1261
        %v1263 = vpop.f32.mrb[0].mxu0
        %1264 = vmatprep.mubr.f32.mxu0 0.0
        %1265 = vmatmul.mubr.f32.gmra.mrb[0].mxu0 %v1107
        %v1266 = vpop.f32.mrb[0].mxu0
        %v1267 = vadd.f32 0.0, %v1266
        %v1268 = vpop.f32.mrb[0].mxu0
        %1269 = vmatprep.mubr.f32.mxu0 0.0
        %1270 = vmatmul.mubr.f32.gmra.mrb[0].mxu0 %v1110
        %v1271 = vpop.f32.mrb[0].mxu0
        %v1272 = vadd.f32 0.0, %v1271
        %v1273 = vpop.f32.mrb[0].mxu0
        %1274 = vmatprep.mubr.f32.mxu0 0.0
        %1275 = vmatmul.mubr.f32.gmra.mrb[0].mxu0 %v1113
        %v1276 = vpop.f32.mrb[0].mxu0
        %v1277 = vadd.f32 0.0, %v1276
        %v1278 = vpop.f32.mrb[0].mxu0
        %1279 = vmatprep.mubr.f32.mxu0 0.0
        %1280 = vmatmul.mubr.f32.gmra.mrb[0].mxu0 %v1116
        %v1281 = vpop.f32.mrb[0].mxu0
        %v1282 = vadd.f32 0.0, %v1281
        %v1283 = vpop.f32.mrb[0].mxu0
        %1284 = vmatprep.mubr.f32.mxu0 0.0
        %1285 = vmatmul.mubr.f32.gmra.mrb[0].mxu0 %v1119
        %v1286 = vpop.f32.mrb[0].mxu0
        %v1287 = vadd.f32 0.0, %v1286
        %v1288 = vpop.f32.mrb[0].mxu0
        %1289 = vmatprep.mubr.f32.mxu0 0.0
        %1290 = vmatmul.mubr.f32.gmra.mrb[0].mxu0 %v1122
        %v1291 = vpop.f32.mrb[0].mxu0
        %v1292 = vadd.f32 0.0, %v1291
        %v1293 = vpop.f32.mrb[0].mxu0
        %1294 = vmatprep.mubr.f32.mxu0 0.0
        %1295 = vmatmul.mubr.f32.gmra.mrb[0].mxu0 %v1125
        %v1296 = vpop.f32.mrb[0].mxu0
        %v1297 = vadd.f32 0.0, %v1296
        %v1298 = vpop.f32.mrb[0].mxu0
        %1299 = vmatprep.mubr.f32.mxu0 0.0
        %1300 = vmatmul.mubr.f32.gmra.mrb[0].mxu0 %v1128
        %v1301 = vpop.f32.mrb[0].mxu0
        %v1302 = vadd.f32 0.0, %v1301
        %v1303 = vpop.f32.mrb[0].mxu0
        %1304 = vmatprep.mubr.f32.mxu0 0.0
        %1305 = vmatmul.mubr.f32.gmra.mrb[0].mxu0 %v1131
        %v1306 = vpop.f32.mrb[0].mxu0
        %v1307 = vadd.f32 0.0, %v1306
        %v1308 = vpop.f32.mrb[0].mxu0
        %1309 = vmatprep.mubr.f32.mxu0 0.0
        %1310 = vmatmul.mubr.f32.gmra.mrb[0].mxu0 %v1134
        %v1311 = vpop.f32.mrb[0].mxu0
        %v1312 = vadd.f32 0.0, %v1311
        %v1313 = vpop.f32.mrb[0].mxu0
        %1314 = vmatprep.mubr.f32.mxu0 0.0
        %1315 = vmatmul.mubr.f32.gmra.mrb[0].mxu0 %v1137
        %v1316 = vpop.f32.mrb[0].mxu0
        %v1317 = vadd.f32 0.0, %v1316
        %v1318 = vpop.f32.mrb[0].mxu0
        %1319 = vmatprep.mubr.f32.mxu0 0.0
        %1320 = vmatmul.mubr.f32.gmra.mrb[0].mxu0 %v1140
        %v1321 = vpop.f32.mrb[0].mxu0
        %v1322 = vadd.f32 0.0, %v1321
        %v1323 = vpop.f32.mrb[0].mxu0
        %1324 = vmatprep.mubr.f32.mxu0 0.0
        %1325 = vmatmul.mubr.f32.gmra.mrb[0].mxu0 %v1143
        %v1326 = vpop.f32.mrb[0].mxu0
        %v1327 = vadd.f32 0.0, %v1326
        %v1328 = vpop.f32.mrb[0].mxu0
        %1329 = vmatprep.mubr.f32.mxu0 0.0
        %1330 = vmatmul.mubr.f32.gmra.mrb[0].mxu0 %v1146
        %v1331 = vpop.f32.mrb[0].mxu0
        %v1332 = vadd.f32 0.0, %v1331
        %v1333 = vpop.f32.mrb[0].mxu0
        %1334 = vmatprep.mubr.f32.mxu0 0.0
        %1335 = vmatmul.mubr.f32.gmra.mrb[0].mxu0 %v1149
        %v1336 = vpop.f32.mrb[0].mxu0
        %v1337 = vadd.f32 0.0, %v1336
        %v1338 = vpop.f32.mrb[0].mxu0
        %1339 = vmatprep.mubr.f32.mxu0 0.0
        %1340 = vmatmul.mubr.f32.gmra.mrb[0].mxu0 %v1152
        %v1341 = vpop.f32.mrb[0].mxu0
        %v1342 = vadd.f32 0.0, %v1341
        %v1343 = vpop.f32.mrb[0].mxu0
        %1344 = vmatprep.mubr.f32.mxu0 0.0
        %1345 = vmatmul.mubr.f32.gmra.mrb[0].mxu0 %v1155
        %v1346 = vpop.f32.mrb[0].mxu0
        %v1347 = vadd.f32 0.0, %v1346
        %v1348 = vpop.f32.mrb[0].mxu0
        %1349 = vmatprep.mubr.f32.mxu0 0.0
        %1350 = vmatmul.mubr.f32.gmra.mrb[0].mxu0 %v1158
        %v1351 = vpop.f32.mrb[0].mxu0
        %v1352 = vadd.f32 0.0, %v1351
        %v1353 = vpop.f32.mrb[0].mxu0
        %1354 = vmatprep.mubr.f32.mxu0 0.0
        %1355 = vmatmul.mubr.f32.gmra.mrb[0].mxu0 %v1161
        %v1356 = vpop.f32.mrb[0].mxu0
        %v1357 = vadd.f32 0.0, %v1356
        %v1358 = vpop.f32.mrb[0].mxu0
        %1359 = vmatprep.mubr.f32.mxu0 0.0
        %1360 = vmatmul.mubr.f32.gmra.mrb[0].mxu0 %v1164
        %v1361 = vpop.f32.mrb[0].mxu0
        %v1362 = vadd.f32 0.0, %v1361
        %v1363 = vpop.f32.mrb[0].mxu0
        %1364 = vmatprep.mubr.f32.mxu0 0.0
        %1365 = vmatmul.mubr.f32.gmra.mrb[0].mxu0 %v1167
        %v1366 = vpop.f32.mrb[0].mxu0
        %v1367 = vadd.f32 0.0, %v1366
        %v1368 = vpop.f32.mrb[0].mxu0
        %1369 = vmatprep.mubr.f32.mxu0 0.0
        %1370 = vmatmul.mubr.f32.gmra.mrb[0].mxu0 %v1170
        %v1371 = vpop.f32.mrb[0].mxu0
        %v1372 = vadd.f32 0.0, %v1371
        %v1373 = vpop.f32.mrb[0].mxu0
        %1374 = vmatprep.mubr.f32.mxu0 0.0
        %1375 = vmatmul.mubr.f32.gmra.mrb[0].mxu0 %v1173
        %v1376 = vpop.f32.mrb[0].mxu0
        %v1377 = vadd.f32 0.0, %v1376
        %v1378 = vpop.f32.mrb[0].mxu0
        %1379 = vmatprep.mubr.f32.mxu0 0.0
        %1380 = vmatmul.mubr.f32.gmra.mrb[0].mxu0 %v1176
        %v1381 = vpop.f32.mrb[0].mxu0
        %v1382 = vadd.f32 0.0, %v1381
        %v1383 = vpop.f32.mrb[0].mxu0
        %1384 = vmatprep.mubr.f32.mxu0 0.0
        %1385 = vmatmul.mubr.f32.gmra.mrb[0].mxu0 %v1179
        %v1386 = vpop.f32.mrb[0].mxu0
        %v1387 = vadd.f32 0.0, %v1386
        %v1388 = vpop.f32.mrb[0].mxu0
        %1389 = vmatprep.mubr.f32.mxu0 0.0
        %1390 = vmatmul.mubr.f32.gmra.mrb[0].mxu0 %v1182
        %v1391 = vpop.f32.mrb[0].mxu0
        %v1392 = vadd.f32 0.0, %v1391
        %v1393 = vpop.f32.mrb[0].mxu0
        %1394 = vmatprep.mubr.f32.mxu0 0.0
        %1395 = vmatmul.mubr.f32.gmra.mrb[0].mxu0 %v1185
        %v1396 = vpop.f32.mrb[0].mxu0
        %v1397 = vadd.f32 0.0, %v1396
        %v1398 = vpop.f32.mrb[0].mxu0
        %1399 = vmatprep.mubr.f32.mxu0 0.0
        %1400 = vmatmul.mubr.f32.gmra.mrb[0].mxu0 %v1188
        %v1401 = vpop.f32.mrb[0].mxu0
        %v1402 = vadd.f32 0.0, %v1401
        %v1403 = vpop.f32.mrb[0].mxu0
        %1404 = vdwg.mxu0
        %v1405 = vmul.f32 %v1257, %v1257
        %v1406 = vmul.f32 %v1262, %v1262
        %v1407 = vmul.f32 %v1267, %v1267
        %v1408 = vmul.f32 %v1272, %v1272
        %v1409 = vmul.f32 %v1277, %v1277
        %v1410 = vmul.f32 %v1282, %v1282
        %v1411 = vmul.f32 %v1287, %v1287
        %v1412 = vmul.f32 %v1292, %v1292
        %v1413 = vmul.f32 %v1297, %v1297
        %v1414 = vmul.f32 %v1302, %v1302
        %v1415 = vmul.f32 %v1307, %v1307
        %v1416 = vmul.f32 %v1312, %v1312
        %v1417 = vmul.f32 %v1257, %v1287
        %v1418 = vmul.f32 %v1262, %v1292
        %v1419 = vmul.f32 %v1267, %v1297
        %v1420 = vmul.f32 %v1272, %v1302
        %v1421 = vmul.f32 %v1277, %v1307
        %v1422 = vmul.f32 %v1282, %v1312
        %v1423 = vsub.f32 %v1317, %v1405
        %v1424 = vsub.f32 %v1322, %v1406
        %v1425 = vsub.f32 %v1327, %v1407
        %v1426 = vsub.f32 %v1332, %v1408
        %v1427 = vsub.f32 %v1337, %v1409
        %v1428 = vsub.f32 %v1342, %v1410
        %v1429 = vsub.f32 %v1347, %v1411
        %v1430 = vsub.f32 %v1352, %v1412
        %v1431 = vsub.f32 %v1357, %v1413
        %v1432 = vsub.f32 %v1362, %v1414
        %v1433 = vsub.f32 %v1367, %v1415
        %v1434 = vsub.f32 %v1372, %v1416
        %v1435 = vsub.f32 %v1377, %v1417
        %v1436 = vsub.f32 %v1382, %v1418
        %v1437 = vsub.f32 %v1387, %v1419
        %v1438 = vsub.f32 %v1392, %v1420
        %v1439 = vsub.f32 %v1397, %v1421
        %v1440 = vsub.f32 %v1402, %v1422
        %v1441 = vmul.f32 %v1417, 2.0
        %v1442 = vmul.f32 %v1418, 2.0
        %v1443 = vmul.f32 %v1419, 2.0
        %v1444 = vmul.f32 %v1420, 2.0
        %v1445 = vmul.f32 %v1421, 2.0
        %v1446 = vmul.f32 %v1422, 2.0
        %v1447 = vadd.f32 %v1441, 0.0001
        %v1448 = vadd.f32 %v1442, 0.0001
        %v1449 = vadd.f32 %v1443, 0.0001
        %v1450 = vadd.f32 %v1444, 0.0001
        %v1451 = vadd.f32 %v1445, 0.0001
        %v1452 = vadd.f32 %v1446, 0.0001
        %v1453 = vmul.f32 %v1435, 2.0
        %v1454 = vmul.f32 %v1436, 2.0
        %v1455 = vmul.f32 %v1437, 2.0
        %v1456 = vmul.f32 %v1438, 2.0
        %v1457 = vmul.f32 %v1439, 2.0
        %v1458 = vmul.f32 %v1440, 2.0
        %v1459 = vadd.f32 %v1453, 0.0009
        %v1460 = vadd.f32 %v1454, 0.0009
        %v1461 = vadd.f32 %v1455, 0.0009
        %v1462 = vadd.f32 %v1456, 0.0009
        %v1463 = vadd.f32 %v1457, 0.0009
        %v1464 = vadd.f32 %v1458, 0.0009
        %v1465 = vmul.f32 %v1447, %v1459
        %v1466 = vmul.f32 %v1448, %v1460
        %v1467 = vmul.f32 %v1449, %v1461
        %v1468 = vmul.f32 %v1450, %v1462
        %v1469 = vmul.f32 %v1451, %v1463
        %v1470 = vmul.f32 %v1452, %v1464
        %v1471 = vadd.f32 %v1405, %v1411
        %v1472 = vadd.f32 %v1406, %v1412
        %v1473 = vadd.f32 %v1407, %v1413
        %v1474 = vadd.f32 %v1408, %v1414
        %v1475 = vadd.f32 %v1409, %v1415
        %v1476 = vadd.f32 %v1410, %v1416
        %v1477 = vadd.f32 %v1471, 0.0001
        %v1478 = vadd.f32 %v1472, 0.0001
        %v1479 = vadd.f32 %v1473, 0.0001
        %v1480 = vadd.f32 %v1474, 0.0001
        %v1481 = vadd.f32 %v1475, 0.0001
        %v1482 = vadd.f32 %v1476, 0.0001
        %v1483 = vadd.f32 %v1423, %v1429
        %v1484 = vadd.f32 %v1424, %v1430
        %v1485 = vadd.f32 %v1425, %v1431
        %v1486 = vadd.f32 %v1426, %v1432
        %v1487 = vadd.f32 %v1427, %v1433
        %v1488 = vadd.f32 %v1428, %v1434
        %v1489 = vadd.f32 %v1483, 0.0009
        %v1490 = vadd.f32 %v1484, 0.0009
        %v1491 = vadd.f32 %v1485, 0.0009
        %v1492 = vadd.f32 %v1486, 0.0009
        %v1493 = vadd.f32 %v1487, 0.0009
        %v1494 = vadd.f32 %v1488, 0.0009
        %v1495 = vmul.f32 %v1477, %v1489
        %v1496 = vmul.f32 %v1478, %v1490
        %v1497 = vmul.f32 %v1479, %v1491
        %v1498 = vmul.f32 %v1480, %v1492
        %v1499 = vmul.f32 %v1481, %v1493
        %v1500 = vmul.f32 %v1482, %v1494
        %v1501 = vrcp.pop %v1495
        %v1502 = vmul.f32 %v1465, %v1501
        %v1503 = vrcp.pop %v1496
        %v1504 = vmul.f32 %v1466, %v1503
        %v1505 = vrcp.pop %v1497
        %v1506 = vmul.f32 %v1467, %v1505
        %v1507 = vrcp.pop %v1498
        %v1508 = vmul.f32 %v1468, %v1507
        %v1509 = vrcp.pop %v1499
        %v1510 = vmul.f32 %v1469, %v1509
        %v1511 = vrcp.pop %v1500
        %v1512 = vmul.f32 %v1470, %v1511
        %v1513 = vsel %vm314, %v1502, 0.0
        %1514 = vadd.xlane.f32.xlu0 %v1513
        %v1515 = vpop.xlane.xlu0 %1514
        %v1516 = vsel %vm314, %v1504, 0.0
        %1517 = vadd.xlane.f32.xlu0 %v1516
        %v1518 = vpop.xlane.xlu0 %1517
        %v1519 = vsel %vm314, %v1506, 0.0
        %1520 = vadd.xlane.f32.xlu0 %v1519
        %v1521 = vpop.xlane.xlu0 %1520
        %v1522 = vsel %vm314, %v1508, 0.0
        %1523 = vadd.xlane.f32.xlu0 %v1522
        %v1524 = vpop.xlane.xlu0 %1523
        %v1525 = vsel %vm314, %v1510, 0.0
        %1526 = vadd.xlane.f32.xlu0 %v1525
        %v1527 = vpop.xlane.xlu0 %1526
        %v1528 = vsel %vm314, %v1512, 0.0
        %1529 = vadd.xlane.f32.xlu0 %v1528
        %v1530 = vpop.xlane.xlu0 %1529
        %v1537 = vlaneseq
        %v1538 = vand.u32 %v1537, 127
        %v1539 = vlaneseq
        %v1540 = vshrl.u32 %v1539, 7
        %v1541 = vsub.s32 %v1538, %v1540
        %v1542 = vrot.slane %v1515, %v1541
        %v1543 = vadd.s32 %v1538, 4294967288
        %v1544 = vlaneseq
        %v1545 = vshrl.u32 %v1544, 7
        %v1546 = vsub.s32 %v1543, %v1545
        %v1547 = vrot.slane %v1518, %v1546
        %vm1548 = vcmask 130112
        %v1549 = vsel %vm1548, %v1547, %v1542
        %v1550 = vlaneseq
        %v1551 = vshrl.u32 %v1550, 7
        %v1552 = vsub.s32 %v1538, %v1551
        %v1553 = vrot.slane %v1521, %v1552
        %v1554 = vlaneseq
        %v1555 = vshrl.u32 %v1554, 7
        %v1556 = vsub.s32 %v1543, %v1555
        %v1557 = vrot.slane %v1524, %v1556
        %v1558 = vsel %vm1548, %v1557, %v1553
        %v1559 = vlaneseq
        %v1560 = vshrl.u32 %v1559, 7
        %v1561 = vsub.s32 %v1538, %v1560
        %v1562 = vrot.slane %v1527, %v1561
        %v1563 = vlaneseq
        %v1564 = vshrl.u32 %v1563, 7
        %v1565 = vsub.s32 %v1543, %v1564
        %v1566 = vrot.slane %v1530, %v1565
        %v1567 = vsel %vm1548, %v1566, %v1562
        %vm1568 = vcmask 1041409
        %v1569 = vsel %vm1568, %v1558, %v1549
        %vm1570 = vcmask 1042434
        %v1571 = vsel %vm1570, %v1567, %v1569
        %vm1573 = vcmask 124928
        %v1574 = vsel %vm1573, %v1571, 0.0
        %1575 = vadd.xlane.f32.xlu0 %v1574
        %v1576 = vpop.xlane.xlu0 %1575
        %vm1577 = vcmask 2048
        %1578 = vst.msk [vmem:[%s279] sm:$0x7] %vm1577, %v1576
        %p1579 = scmp.lt.s32.totalorder %s17, 1
        %s1580 = scalar_select %p1579, %s17, 1
        %s1581 = smul.addr %s1580, 4
        %s1582 = scalar_lea.vmem %s4, %s1581
        // Predicated region
        $region53: #{tpu_custom_call.1} parent=35 // pred_check
          %p1583 = pneg %p129
        $region54: #{tpu_custom_call.1} parent=35 // pred_check_branch
          %1585 = sbr.rel (%p1583) target = $region56
        $region55: #{tpu_custom_call.1} parent=35 // pred_region
          _
        $region56: #{tpu_custom_call.1} parent=35 // pred_fallthru
          _
      $region36: #{tpu_custom_call.1} parent=5 // pred_fallthru
        _
      %p1586 = scmp.le.s32.totalorder 2, %s12
      // Predicated region
      $region57: #{tpu_custom_call.1} parent=5 // pred_check
        %p1587 = pneg %p1586
      $region58: #{tpu_custom_call.1} parent=5 // pred_check_branch
        %1589 = sbr.rel (%p1587) target = $region60
      $region59: #{tpu_custom_call.1} parent=5 // pred_region
        %s1590 = ssub.s32 %s12, 2
        // Predicated region
        $region61: #{tpu_custom_call.1} parent=59 // pred_check
          %p1591 = pneg %p135
        $region62: #{tpu_custom_call.1} parent=59 // pred_check_branch
          %1593 = sbr.rel (%p1591) target = $region64
        $region63: #{tpu_custom_call.1} parent=59 // pred_region
          %p1594 = scmp.lt.s32.totalorder %s18, 1
          %s1595 = scalar_select %p1594, %s18, 1
          %s1596 = smul.addr %s1595, 4
          %s1597 = scalar_lea.vmem %s4, %s1596
        $region64: #{tpu_custom_call.1} parent=59 // pred_fallthru
          _
      $region60: #{tpu_custom_call.1} parent=5 // pred_fallthru
        _
    $region6: #{tpu_custom_call.1} parent=1 // loop_footer
      %s16 = sadd.s32 1, %s12
    $region7: #{tpu_custom_call.1} parent=1 // loop_footer_branch
      %11 = sbr.rel target = $region3
    $region8: #{tpu_custom_call.1} parent=1 // loop_exit
      _
    %1598 = vsyncpa [#allocation3], 1
    %s1599 = scalar_lea.sflag [#allocation3], 1
    %1600 = vsyncpa %s1599, 1
    %1601 = vsyncpa [#allocation5], 1

</llo_original>
